<compile_context>
chip_gen: v7x
topology: tpu7x:2x2x1
jax: 0.10.0
libtpu: 0.0.40
codegen_flags: <defaults>
</compile_context>

<pallas_src>
import math

import jax
import jax.numpy as jnp
from jax.experimental import pallas as pl
from jax.experimental.pallas import tpu as pltpu

# ---- config (mirrors config.eqn_config / config.net_config / bsde) ----
DIM = 4                       # eqn_config.dim
NUM_HIDDENS = [16, 16]        # net_config.num_hiddens
NUM_TIME_INTERVAL = 5         # eqn_config.num_time_interval
TOTAL_TIME = 1.0
DELTA_T = TOTAL_TIME / NUM_TIME_INTERVAL   # bsde.delta_t
LAMBD = 1.0                   # HJB-LQ generator coefficient
BN_EPS = 1e-6
BATCH = 8
Y_INIT_RANGE = (0.0, 1.0)     # net_config.y_init_range

LAYER_SIZES = [DIM] + NUM_HIDDENS + [DIM]   # feature width after each BN layer
NUM_DENSE = len(NUM_HIDDENS) + 1            # dense layers per subnet
PAD_W = max(LAYER_SIZES)                    # lane-pad width for packed blobs


# ------------------------------ fused kernel -----------------------------
def make_fused_kernel(num_dense):
    """One kernel for the full forward pass.

    refs layout (inputs):
      dw_ref  : (T,   B, D)  time-major Brownian increments
      x_ref   : (T+1, B, D)  time-major state path
      y0_ref  : (B, 1)       broadcast y_init
      z0_ref  : (B, D)       broadcast z_init
      w_refs  : num_dense refs, each (T-1, in_k, out_k)
      b_ref   : (T-1, num_dense,     PAD_W)  lane-padded dense biases
      g_ref   : (T-1, num_dense + 1, PAD_W)  lane-padded BN gammas
      be_ref  : (T-1, num_dense + 1, PAD_W)  lane-padded BN betas
    output:
      y_out_ref : (B, 1)
    """
    sizes = LAYER_SIZES

    def bn(h, gamma, beta):
        # training-mode BatchNorm1d, single pass: var = E[h^2] - mean^2
        mean = jnp.mean(h, axis=0, keepdims=True)
        mean_sq = jnp.mean(h * h, axis=0, keepdims=True)
        var = mean_sq - mean * mean
        return (h - mean) * jax.lax.rsqrt(var + BN_EPS) * gamma + beta

    def y_step(y, z, dw_t):
        # HJB-LQ generator: f = -lambd * ||z||^2  (t, x_t unused)
        f = -LAMBD * jnp.sum(z * z, axis=1, keepdims=True)
        return y - DELTA_T * f + jnp.sum(z * dw_t, axis=1, keepdims=True)

    def kernel(*refs):
        dw_ref, x_ref, y0_ref, z0_ref = refs[:4]
        w_refs = refs[4:4 + num_dense]
        b_ref, g_ref, be_ref = refs[4 + num_dense:4 + num_dense + 3]
        y_out_ref = refs[-1]

        y = y0_ref[...]                      # (B, 1) carry
        z = z0_ref[...]                      # (B, D) carry

        for t in range(NUM_TIME_INTERVAL - 1):
            # ---- y update for step t ----
            y = y_step(y, z, dw_ref[t])

            # ---- z update: subnet_t(x_{t+1}) / dim ----
            g_t = g_ref[t]                   # (num_dense+1, PAD_W)
            be_t = be_ref[t]
            b_t = b_ref[t]                   # (num_dense,   PAD_W)

            h = bn(x_ref[t + 1],
                   g_t[0:1, :sizes[0]], be_t[0:1, :sizes[0]])
            for k in range(num_dense):
                w = w_refs[k][t]             # (in_k, out_k)
                h = (jnp.dot(h, w, preferred_element_type=jnp.float32)
                     + b_t[k:k + 1, :sizes[k + 1]])
                h = bn(h, g_t[k + 1:k + 2, :sizes[k + 1]],
                       be_t[k + 1:k + 2, :sizes[k + 1]])
                if k < num_dense - 1:
                    h = jnp.maximum(h, 0.0)
            z = h / DIM

        # ---- final y update (no subnet) ----
        y = y_step(y, z, dw_ref[NUM_TIME_INTERVAL - 1])
        y_out_ref[...] = y

    return kernel


# ------------------------- parameter repacking ---------------------------
def pack_params(params):
    """Stack per-time-step subnet params into a handful of arrays."""
    T1 = NUM_TIME_INTERVAL - 1

    def pad_row(v):                          # (1, n) -> (1, PAD_W)
        return jnp.pad(v, ((0, 0), (0, PAD_W - v.shape[1])))

    packed = {}
    for k in range(NUM_DENSE):
        packed[f"w{k}"] = jnp.stack(
            [params["subnets"][t]["dense"][k][0] for t in range(T1)])
    packed["b"] = jnp.stack(
        [jnp.concatenate([pad_row(b) for (_, b) in params["subnets"][t]["dense"]],
                         axis=0) for t in range(T1)])
    packed["g"] = jnp.stack(
        [jnp.concatenate([pad_row(g) for (g, _) in params["subnets"][t]["bn"]],
                         axis=0) for t in range(T1)])
    packed["be"] = jnp.stack(
        [jnp.concatenate([pad_row(be) for (_, be) in params["subnets"][t]["bn"]],
                         axis=0) for t in range(T1)])
    return packed


# ---------------------------- model wrapper -----------------------------
@jax.jit
def nonshared_model_forward(dw, x, y_init, z_init, packed):
    """dw: (B, D, T), x: (B, D, T+1)  ->  y: (B, 1)"""
    B = dw.shape[0]

    # time-major, contiguous per-step (B, D) slices
    dw_tm = jnp.transpose(dw, (2, 0, 1))     # (T,   B, D)
    x_tm = jnp.transpose(x, (2, 0, 1))       # (T+1, B, D)

    all_one = jnp.ones((B, 1), jnp.float32)
    y0 = all_one * y_init                    # (B, 1)
    z0 = all_one @ z_init                    # (B, D)

    flat = ([dw_tm, x_tm, y0, z0]
            + [packed[f"w{k}"] for k in range(NUM_DENSE)]
            + [packed["b"], packed["g"], packed["be"]])

    kernel = make_fused_kernel(NUM_DENSE)
    return pl.pallas_call(
        kernel,
        out_shape=jax.ShapeDtypeStruct((B, 1), jnp.float32),
        in_specs=[pl.BlockSpec(memory_space=pltpu.MemorySpace.VMEM)
                  for _ in range(len(flat))],
        out_specs=pl.BlockSpec(memory_space=pltpu.MemorySpace.VMEM),
    )(*flat)


# ----------------------- deterministic parameter init -------------------
def init_params(key):
    ky, kz, *subkeys = jax.random.split(key, 2 + (NUM_TIME_INTERVAL - 1))
    y_init = jax.random.uniform(ky, (1,), jnp.float32,
                                Y_INIT_RANGE[0], Y_INIT_RANGE[1])
    z_init = jax.random.uniform(kz, (1, DIM), jnp.float32, -0.1, 0.1)

    layer_sizes = LAYER_SIZES                # dense: dim->h0->h1->dim
    bn_sizes = LAYER_SIZES                   # bn features per layer
    subnets = []
    for sk in subkeys:
        ks = jax.random.split(sk, len(layer_sizes) - 1)
        dense = []
        for k_, fin, fout in zip(ks, layer_sizes[:-1], layer_sizes[1:]):
            kw, kb = jax.random.split(k_)
            bound = 1.0 / math.sqrt(fin)
            w = jax.random.uniform(kw, (fin, fout), jnp.float32, -bound, bound)
            b = jax.random.uniform(kb, (1, fout), jnp.float32, -bound, bound)
            dense.append((w, b))
        bn = [(jnp.ones((1, f), jnp.float32), jnp.zeros((1, f), jnp.float32))
              for f in bn_sizes]
        subnets.append({"dense": dense, "bn": bn})
    return {"y_init": y_init, "z_init": z_init, "subnets": subnets}


# ------------------------- pure-JAX reference ---------------------------
def reference_forward(dw, x, params):
    B = dw.shape[0]
    y = jnp.ones((B, 1), jnp.float32) * params["y_init"]
    z = jnp.ones((B, 1), jnp.float32) @ params["z_init"]

    def f(z):
        return -LAMBD * jnp.sum(z * z, axis=1, keepdims=True)

    def subnet(h, p):
        def bn(h, gb):
            g, b = gb
            m = h.mean(0, keepdims=True)
            v = jnp.square(h - m).mean(0, keepdims=True)
            return (h - m) * jax.lax.rsqrt(v + BN_EPS) * g + b
        h = bn(h, p["bn"][0])
        for k in range(len(p["dense"]) - 1):
            w, b = p["dense"][k]
            h = jnp.maximum(bn(h @ w + b, p["bn"][k + 1]), 0.0)
        w, b = p["dense"][-1]
        return bn(h @ w + b, p["bn"][-1])

    for t in range(NUM_TIME_INTERVAL - 1):
        y = y - DELTA_T * f(z) + jnp.sum(z * dw[:, :, t], 1, keepdims=True)
        z = subnet(x[:, :, t + 1], params["subnets"][t]) / DIM
    y = y - DELTA_T * f(z) + jnp.sum(z * dw[:, :, -1], 1, keepdims=True)
    return y


# --------------------------------- main ---------------------------------
if __name__ == "__main__":
    key = jax.random.PRNGKey(0)
    kp, kd = jax.random.split(key)
    params = init_params(kp)
    packed = pack_params(params)

    # Brownian increments and HJB-LQ state path: x_{t+1} = x_t + sqrt(2)*dw_t
    dw = jax.random.normal(kd, (BATCH, DIM, NUM_TIME_INTERVAL),
                           jnp.float32) * math.sqrt(DELTA_T)
    xs = [jnp.zeros((BATCH, DIM), jnp.float32)]
    for t in range(NUM_TIME_INTERVAL):
        xs.append(xs[-1] + math.sqrt(2.0) * dw[:, :, t])
    x = jnp.stack(xs, axis=-1)                      # (B, D, T+1)

    y = nonshared_model_forward(dw, x, params["y_init"], params["z_init"],
                                packed)
    y = jax.block_until_ready(y)

    y_ref = reference_forward(dw, x, params)
    assert y.shape == (BATCH, 1)
    assert jnp.allclose(y, y_ref, atol=1e-4, rtol=1e-4), (y, y_ref)
    print("KERNEL_OK")
</pallas_src>

<mosaic_0001>
module attributes {stable_mosaic.version = 11 : i64} {
  func.func @kernel(%arg0: memref<5x8x4xf32, #tpu.memory_space<vmem>>, %arg1: memref<6x8x4xf32, #tpu.memory_space<vmem>>, %arg2: memref<8x1xf32, #tpu.memory_space<vmem>>, %arg3: memref<8x4xf32, #tpu.memory_space<vmem>>, %arg4: memref<4x4x16xf32, #tpu.memory_space<vmem>>, %arg5: memref<4x16x16xf32, #tpu.memory_space<vmem>>, %arg6: memref<4x16x4xf32, #tpu.memory_space<vmem>>, %arg7: memref<4x3x16xf32, #tpu.memory_space<vmem>>, %arg8: memref<4x4x16xf32, #tpu.memory_space<vmem>>, %arg9: memref<4x4x16xf32, #tpu.memory_space<vmem>>, %arg10: memref<8x1xf32, #tpu.memory_space<vmem>>) attributes {dimension_semantics = [], scalar_prefetch = 0 : i64, scratch_operands = 0 : i64, tpu.core_type = #tpu.core_type<tc>} {
    %c0 = arith.constant 0 : index
    %c0_0 = arith.constant 0 : index
    %0 = vector.load %arg2[%c0, %c0_0] : memref<8x1xf32, #tpu.memory_space<vmem>>, vector<8x1xf32>
    %c0_1 = arith.constant 0 : index
    %c0_2 = arith.constant 0 : index
    %1 = vector.load %arg3[%c0_1, %c0_2] : memref<8x4xf32, #tpu.memory_space<vmem>>, vector<8x4xf32>
    %c0_3 = arith.constant 0 : index
    %c0_4 = arith.constant 0 : index
    %c0_5 = arith.constant 0 : index
    %2 = vector.load %arg0[%c0_3, %c0_4, %c0_5] : memref<5x8x4xf32, #tpu.memory_space<vmem>>, vector<1x8x4xf32>
    %3 = vector.shape_cast %2 : vector<1x8x4xf32> to vector<8x4xf32>
    %4 = arith.mulf %1, %1 : vector<8x4xf32>
    %cst = arith.constant dense<0.000000e+00> : vector<8xf32>
    %5 = vector.multi_reduction <add>, %4, %cst [1] : vector<8x4xf32> to vector<8xf32>
    %6 = vector.shape_cast %5 : vector<8xf32> to vector<8x1xf32>
    %cst_6 = arith.constant -1.000000e+00 : f32
    %7 = vector.broadcast %cst_6 : f32 to vector<8x1xf32>
    %8 = arith.mulf %7, %6 : vector<8x1xf32>
    %cst_7 = arith.constant 2.000000e-01 : f32
    %9 = vector.broadcast %cst_7 : f32 to vector<8x1xf32>
    %10 = arith.mulf %9, %8 : vector<8x1xf32>
    %11 = arith.subf %0, %10 : vector<8x1xf32>
    %12 = arith.mulf %1, %3 : vector<8x4xf32>
    %cst_8 = arith.constant dense<0.000000e+00> : vector<8xf32>
    %13 = vector.multi_reduction <add>, %12, %cst_8 [1] : vector<8x4xf32> to vector<8xf32>
    %14 = vector.shape_cast %13 : vector<8xf32> to vector<8x1xf32>
    %15 = arith.addf %11, %14 : vector<8x1xf32>
    %c0_9 = arith.constant 0 : index
    %c0_10 = arith.constant 0 : index
    %c0_11 = arith.constant 0 : index
    %16 = vector.load %arg8[%c0_9, %c0_10, %c0_11] : memref<4x4x16xf32, #tpu.memory_space<vmem>>, vector<1x4x16xf32>
    %17 = vector.shape_cast %16 : vector<1x4x16xf32> to vector<4x16xf32>
    %c0_12 = arith.constant 0 : index
    %c0_13 = arith.constant 0 : index
    %c0_14 = arith.constant 0 : index
    %18 = vector.load %arg9[%c0_12, %c0_13, %c0_14] : memref<4x4x16xf32, #tpu.memory_space<vmem>>, vector<1x4x16xf32>
    %19 = vector.shape_cast %18 : vector<1x4x16xf32> to vector<4x16xf32>
    %c0_15 = arith.constant 0 : index
    %c0_16 = arith.constant 0 : index
    %c0_17 = arith.constant 0 : index
    %20 = vector.load %arg7[%c0_15, %c0_16, %c0_17] : memref<4x3x16xf32, #tpu.memory_space<vmem>>, vector<1x3x16xf32>
    %21 = vector.shape_cast %20 : vector<1x3x16xf32> to vector<3x16xf32>
    %c1 = arith.constant 1 : index
    %c0_18 = arith.constant 0 : index
    %c0_19 = arith.constant 0 : index
    %22 = vector.load %arg1[%c1, %c0_18, %c0_19] : memref<6x8x4xf32, #tpu.memory_space<vmem>>, vector<1x8x4xf32>
    %23 = vector.shape_cast %22 : vector<1x8x4xf32> to vector<8x4xf32>
    %24 = vector.extract_strided_slice %17 {offsets = [0, 0], sizes = [1, 4], strides = [1, 1]} : vector<4x16xf32> to vector<1x4xf32>
    %25 = vector.extract_strided_slice %19 {offsets = [0, 0], sizes = [1, 4], strides = [1, 1]} : vector<4x16xf32> to vector<1x4xf32>
    %cst_20 = arith.constant dense<0.000000e+00> : vector<4xf32>
    %26 = vector.multi_reduction <add>, %23, %cst_20 [0] : vector<8x4xf32> to vector<4xf32>
    %27 = vector.shape_cast %26 : vector<4xf32> to vector<1x4xf32>
    %cst_21 = arith.constant 8.000000e+00 : f32
    %28 = vector.broadcast %cst_21 : f32 to vector<1x4xf32>
    %29 = arith.divf %27, %28 : vector<1x4xf32>
    %30 = arith.mulf %23, %23 : vector<8x4xf32>
    %cst_22 = arith.constant dense<0.000000e+00> : vector<4xf32>
    %31 = vector.multi_reduction <add>, %30, %cst_22 [0] : vector<8x4xf32> to vector<4xf32>
    %32 = vector.shape_cast %31 : vector<4xf32> to vector<1x4xf32>
    %cst_23 = arith.constant 8.000000e+00 : f32
    %33 = vector.broadcast %cst_23 : f32 to vector<1x4xf32>
    %34 = arith.divf %32, %33 : vector<1x4xf32>
    %35 = arith.mulf %29, %29 : vector<1x4xf32>
    %36 = arith.subf %34, %35 : vector<1x4xf32>
    %37 = vector.broadcast %29 : vector<1x4xf32> to vector<8x4xf32>
    %38 = arith.subf %23, %37 : vector<8x4xf32>
    %cst_24 = arith.constant 9.99999997E-7 : f32
    %39 = vector.broadcast %cst_24 : f32 to vector<1x4xf32>
    %40 = arith.addf %36, %39 : vector<1x4xf32>
    %41 = math.rsqrt %40 : vector<1x4xf32>
    %42 = vector.broadcast %41 : vector<1x4xf32> to vector<8x4xf32>
    %43 = arith.mulf %38, %42 : vector<8x4xf32>
    %44 = vector.broadcast %24 : vector<1x4xf32> to vector<8x4xf32>
    %45 = arith.mulf %43, %44 : vector<8x4xf32>
    %46 = vector.broadcast %25 : vector<1x4xf32> to vector<8x4xf32>
    %47 = arith.addf %45, %46 : vector<8x4xf32>
    %c0_25 = arith.constant 0 : index
    %c0_26 = arith.constant 0 : index
    %c0_27 = arith.constant 0 : index
    %48 = vector.load %arg4[%c0_25, %c0_26, %c0_27] : memref<4x4x16xf32, #tpu.memory_space<vmem>>, vector<1x4x16xf32>
    %49 = vector.shape_cast %48 : vector<1x4x16xf32> to vector<4x16xf32>
    %cst_28 = arith.constant dense<0.000000e+00> : vector<8x16xf32>
    %50 = tpu.matmul %47, %49, %cst_28 {dimension_numbers = #tpu.dot_dimension_numbers<[1], [0], [0], [1], [0, 0, 1, 1], [], []>} : vector<8x4xf32>, vector<4x16xf32>, vector<8x16xf32> -> vector<8x16xf32>
    %51 = vector.extract_strided_slice %21 {offsets = [0, 0], sizes = [1, 16], strides = [1, 1]} : vector<3x16xf32> to vector<1x16xf32>
    %52 = vector.broadcast %51 : vector<1x16xf32> to vector<8x16xf32>
    %53 = arith.addf %50, %52 : vector<8x16xf32>
    %54 = vector.extract_strided_slice %17 {offsets = [1, 0], sizes = [1, 16], strides = [1, 1]} : vector<4x16xf32> to vector<1x16xf32>
    %55 = vector.extract_strided_slice %19 {offsets = [1, 0], sizes = [1, 16], strides = [1, 1]} : vector<4x16xf32> to vector<1x16xf32>
    %cst_29 = arith.constant dense<0.000000e+00> : vector<16xf32>
    %56 = vector.multi_reduction <add>, %53, %cst_29 [0] : vector<8x16xf32> to vector<16xf32>
    %57 = vector.shape_cast %56 : vector<16xf32> to vector<1x16xf32>
    %cst_30 = arith.constant 8.000000e+00 : f32
    %58 = vector.broadcast %cst_30 : f32 to vector<1x16xf32>
    %59 = arith.divf %57, %58 : vector<1x16xf32>
    %60 = arith.mulf %53, %53 : vector<8x16xf32>
    %cst_31 = arith.constant dense<0.000000e+00> : vector<16xf32>
    %61 = vector.multi_reduction <add>, %60, %cst_31 [0] : vector<8x16xf32> to vector<16xf32>
    %62 = vector.shape_cast %61 : vector<16xf32> to vector<1x16xf32>
    %cst_32 = arith.constant 8.000000e+00 : f32
    %63 = vector.broadcast %cst_32 : f32 to vector<1x16xf32>
    %64 = arith.divf %62, %63 : vector<1x16xf32>
    %65 = arith.mulf %59, %59 : vector<1x16xf32>
    %66 = arith.subf %64, %65 : vector<1x16xf32>
    %67 = vector.broadcast %59 : vector<1x16xf32> to vector<8x16xf32>
    %68 = arith.subf %53, %67 : vector<8x16xf32>
    %cst_33 = arith.constant 9.99999997E-7 : f32
    %69 = vector.broadcast %cst_33 : f32 to vector<1x16xf32>
    %70 = arith.addf %66, %69 : vector<1x16xf32>
    %71 = math.rsqrt %70 : vector<1x16xf32>
    %72 = vector.broadcast %71 : vector<1x16xf32> to vector<8x16xf32>
    %73 = arith.mulf %68, %72 : vector<8x16xf32>
    %74 = vector.broadcast %54 : vector<1x16xf32> to vector<8x16xf32>
    %75 = arith.mulf %73, %74 : vector<8x16xf32>
    %76 = vector.broadcast %55 : vector<1x16xf32> to vector<8x16xf32>
    %77 = arith.addf %75, %76 : vector<8x16xf32>
    %cst_34 = arith.constant 0.000000e+00 : f32
    %78 = vector.broadcast %cst_34 : f32 to vector<8x16xf32>
    %79 = arith.maximumf %77, %78 : vector<8x16xf32>
    %c0_35 = arith.constant 0 : index
    %c0_36 = arith.constant 0 : index
    %c0_37 = arith.constant 0 : index
    %80 = vector.load %arg5[%c0_35, %c0_36, %c0_37] : memref<4x16x16xf32, #tpu.memory_space<vmem>>, vector<1x16x16xf32>
    %81 = vector.shape_cast %80 : vector<1x16x16xf32> to vector<16x16xf32>
    %cst_38 = arith.constant dense<0.000000e+00> : vector<8x16xf32>
    %82 = tpu.matmul %79, %81, %cst_38 {dimension_numbers = #tpu.dot_dimension_numbers<[1], [0], [0], [1], [0, 0, 1, 1], [], []>} : vector<8x16xf32>, vector<16x16xf32>, vector<8x16xf32> -> vector<8x16xf32>
    %83 = vector.extract_strided_slice %21 {offsets = [1, 0], sizes = [1, 16], strides = [1, 1]} : vector<3x16xf32> to vector<1x16xf32>
    %84 = vector.broadcast %83 : vector<1x16xf32> to vector<8x16xf32>
    %85 = arith.addf %82, %84 : vector<8x16xf32>
    %86 = vector.extract_strided_slice %17 {offsets = [2, 0], sizes = [1, 16], strides = [1, 1]} : vector<4x16xf32> to vector<1x16xf32>
    %87 = vector.extract_strided_slice %19 {offsets = [2, 0], sizes = [1, 16], strides = [1, 1]} : vector<4x16xf32> to vector<1x16xf32>
    %cst_39 = arith.constant dense<0.000000e+00> : vector<16xf32>
    %88 = vector.multi_reduction <add>, %85, %cst_39 [0] : vector<8x16xf32> to vector<16xf32>
    %89 = vector.shape_cast %88 : vector<16xf32> to vector<1x16xf32>
    %cst_40 = arith.constant 8.000000e+00 : f32
    %90 = vector.broadcast %cst_40 : f32 to vector<1x16xf32>
    %91 = arith.divf %89, %90 : vector<1x16xf32>
    %92 = arith.mulf %85, %85 : vector<8x16xf32>
    %cst_41 = arith.constant dense<0.000000e+00> : vector<16xf32>
    %93 = vector.multi_reduction <add>, %92, %cst_41 [0] : vector<8x16xf32> to vector<16xf32>
    %94 = vector.shape_cast %93 : vector<16xf32> to vector<1x16xf32>
    %cst_42 = arith.constant 8.000000e+00 : f32
    %95 = vector.broadcast %cst_42 : f32 to vector<1x16xf32>
    %96 = arith.divf %94, %95 : vector<1x16xf32>
    %97 = arith.mulf %91, %91 : vector<1x16xf32>
    %98 = arith.subf %96, %97 : vector<1x16xf32>
    %99 = vector.broadcast %91 : vector<1x16xf32> to vector<8x16xf32>
    %100 = arith.subf %85, %99 : vector<8x16xf32>
    %cst_43 = arith.constant 9.99999997E-7 : f32
    %101 = vector.broadcast %cst_43 : f32 to vector<1x16xf32>
    %102 = arith.addf %98, %101 : vector<1x16xf32>
    %103 = math.rsqrt %102 : vector<1x16xf32>
    %104 = vector.broadcast %103 : vector<1x16xf32> to vector<8x16xf32>
    %105 = arith.mulf %100, %104 : vector<8x16xf32>
    %106 = vector.broadcast %86 : vector<1x16xf32> to vector<8x16xf32>
    %107 = arith.mulf %105, %106 : vector<8x16xf32>
    %108 = vector.broadcast %87 : vector<1x16xf32> to vector<8x16xf32>
    %109 = arith.addf %107, %108 : vector<8x16xf32>
    %cst_44 = arith.constant 0.000000e+00 : f32
    %110 = vector.broadcast %cst_44 : f32 to vector<8x16xf32>
    %111 = arith.maximumf %109, %110 : vector<8x16xf32>
    %c0_45 = arith.constant 0 : index
    %c0_46 = arith.constant 0 : index
    %c0_47 = arith.constant 0 : index
    %112 = vector.load %arg6[%c0_45, %c0_46, %c0_47] : memref<4x16x4xf32, #tpu.memory_space<vmem>>, vector<1x16x4xf32>
    %113 = vector.shape_cast %112 : vector<1x16x4xf32> to vector<16x4xf32>
    %cst_48 = arith.constant dense<0.000000e+00> : vector<8x4xf32>
    %114 = tpu.matmul %111, %113, %cst_48 {dimension_numbers = #tpu.dot_dimension_numbers<[1], [0], [0], [1], [0, 0, 1, 1], [], []>} : vector<8x16xf32>, vector<16x4xf32>, vector<8x4xf32> -> vector<8x4xf32>
    %115 = vector.extract_strided_slice %21 {offsets = [2, 0], sizes = [1, 4], strides = [1, 1]} : vector<3x16xf32> to vector<1x4xf32>
    %116 = vector.broadcast %115 : vector<1x4xf32> to vector<8x4xf32>
    %117 = arith.addf %114, %116 : vector<8x4xf32>
    %118 = vector.extract_strided_slice %17 {offsets = [3, 0], sizes = [1, 4], strides = [1, 1]} : vector<4x16xf32> to vector<1x4xf32>
    %119 = vector.extract_strided_slice %19 {offsets = [3, 0], sizes = [1, 4], strides = [1, 1]} : vector<4x16xf32> to vector<1x4xf32>
    %cst_49 = arith.constant dense<0.000000e+00> : vector<4xf32>
    %120 = vector.multi_reduction <add>, %117, %cst_49 [0] : vector<8x4xf32> to vector<4xf32>
    %121 = vector.shape_cast %120 : vector<4xf32> to vector<1x4xf32>
    %cst_50 = arith.constant 8.000000e+00 : f32
    %122 = vector.broadcast %cst_50 : f32 to vector<1x4xf32>
    %123 = arith.divf %121, %122 : vector<1x4xf32>
    %124 = arith.mulf %117, %117 : vector<8x4xf32>
    %cst_51 = arith.constant dense<0.000000e+00> : vector<4xf32>
    %125 = vector.multi_reduction <add>, %124, %cst_51 [0] : vector<8x4xf32> to vector<4xf32>
    %126 = vector.shape_cast %125 : vector<4xf32> to vector<1x4xf32>
    %cst_52 = arith.constant 8.000000e+00 : f32
    %127 = vector.broadcast %cst_52 : f32 to vector<1x4xf32>
    %128 = arith.divf %126, %127 : vector<1x4xf32>
    %129 = arith.mulf %123, %123 : vector<1x4xf32>
    %130 = arith.subf %128, %129 : vector<1x4xf32>
    %131 = vector.broadcast %123 : vector<1x4xf32> to vector<8x4xf32>
    %132 = arith.subf %117, %131 : vector<8x4xf32>
    %cst_53 = arith.constant 9.99999997E-7 : f32
    %133 = vector.broadcast %cst_53 : f32 to vector<1x4xf32>
    %134 = arith.addf %130, %133 : vector<1x4xf32>
    %135 = math.rsqrt %134 : vector<1x4xf32>
    %136 = vector.broadcast %135 : vector<1x4xf32> to vector<8x4xf32>
    %137 = arith.mulf %132, %136 : vector<8x4xf32>
    %138 = vector.broadcast %118 : vector<1x4xf32> to vector<8x4xf32>
    %139 = arith.mulf %137, %138 : vector<8x4xf32>
    %140 = vector.broadcast %119 : vector<1x4xf32> to vector<8x4xf32>
    %141 = arith.addf %139, %140 : vector<8x4xf32>
    %cst_54 = arith.constant 4.000000e+00 : f32
    %142 = vector.broadcast %cst_54 : f32 to vector<8x4xf32>
    %143 = arith.divf %141, %142 : vector<8x4xf32>
    %c1_55 = arith.constant 1 : index
    %c0_56 = arith.constant 0 : index
    %c0_57 = arith.constant 0 : index
    %144 = vector.load %arg0[%c1_55, %c0_56, %c0_57] : memref<5x8x4xf32, #tpu.memory_space<vmem>>, vector<1x8x4xf32>
    %145 = vector.shape_cast %144 : vector<1x8x4xf32> to vector<8x4xf32>
    %146 = arith.mulf %143, %143 : vector<8x4xf32>
    %cst_58 = arith.constant dense<0.000000e+00> : vector<8xf32>
    %147 = vector.multi_reduction <add>, %146, %cst_58 [1] : vector<8x4xf32> to vector<8xf32>
    %148 = vector.shape_cast %147 : vector<8xf32> to vector<8x1xf32>
    %cst_59 = arith.constant -1.000000e+00 : f32
    %149 = vector.broadcast %cst_59 : f32 to vector<8x1xf32>
    %150 = arith.mulf %149, %148 : vector<8x1xf32>
    %cst_60 = arith.constant 2.000000e-01 : f32
    %151 = vector.broadcast %cst_60 : f32 to vector<8x1xf32>
    %152 = arith.mulf %151, %150 : vector<8x1xf32>
    %153 = arith.subf %15, %152 : vector<8x1xf32>
    %154 = arith.mulf %143, %145 : vector<8x4xf32>
    %cst_61 = arith.constant dense<0.000000e+00> : vector<8xf32>
    %155 = vector.multi_reduction <add>, %154, %cst_61 [1] : vector<8x4xf32> to vector<8xf32>
    %156 = vector.shape_cast %155 : vector<8xf32> to vector<8x1xf32>
    %157 = arith.addf %153, %156 : vector<8x1xf32>
    %c1_62 = arith.constant 1 : index
    %c0_63 = arith.constant 0 : index
    %c0_64 = arith.constant 0 : index
    %158 = vector.load %arg8[%c1_62, %c0_63, %c0_64] : memref<4x4x16xf32, #tpu.memory_space<vmem>>, vector<1x4x16xf32>
    %159 = vector.shape_cast %158 : vector<1x4x16xf32> to vector<4x16xf32>
    %c1_65 = arith.constant 1 : index
    %c0_66 = arith.constant 0 : index
    %c0_67 = arith.constant 0 : index
    %160 = vector.load %arg9[%c1_65, %c0_66, %c0_67] : memref<4x4x16xf32, #tpu.memory_space<vmem>>, vector<1x4x16xf32>
    %161 = vector.shape_cast %160 : vector<1x4x16xf32> to vector<4x16xf32>
    %c1_68 = arith.constant 1 : index
    %c0_69 = arith.constant 0 : index
    %c0_70 = arith.constant 0 : index
    %162 = vector.load %arg7[%c1_68, %c0_69, %c0_70] : memref<4x3x16xf32, #tpu.memory_space<vmem>>, vector<1x3x16xf32>
    %163 = vector.shape_cast %162 : vector<1x3x16xf32> to vector<3x16xf32>
    %c2 = arith.constant 2 : index
    %c0_71 = arith.constant 0 : index
    %c0_72 = arith.constant 0 : index
    %164 = vector.load %arg1[%c2, %c0_71, %c0_72] : memref<6x8x4xf32, #tpu.memory_space<vmem>>, vector<1x8x4xf32>
    %165 = vector.shape_cast %164 : vector<1x8x4xf32> to vector<8x4xf32>
    %166 = vector.extract_strided_slice %159 {offsets = [0, 0], sizes = [1, 4], strides = [1, 1]} : vector<4x16xf32> to vector<1x4xf32>
    %167 = vector.extract_strided_slice %161 {offsets = [0, 0], sizes = [1, 4], strides = [1, 1]} : vector<4x16xf32> to vector<1x4xf32>
    %cst_73 = arith.constant dense<0.000000e+00> : vector<4xf32>
    %168 = vector.multi_reduction <add>, %165, %cst_73 [0] : vector<8x4xf32> to vector<4xf32>
    %169 = vector.shape_cast %168 : vector<4xf32> to vector<1x4xf32>
    %cst_74 = arith.constant 8.000000e+00 : f32
    %170 = vector.broadcast %cst_74 : f32 to vector<1x4xf32>
    %171 = arith.divf %169, %170 : vector<1x4xf32>
    %172 = arith.mulf %165, %165 : vector<8x4xf32>
    %cst_75 = arith.constant dense<0.000000e+00> : vector<4xf32>
    %173 = vector.multi_reduction <add>, %172, %cst_75 [0] : vector<8x4xf32> to vector<4xf32>
    %174 = vector.shape_cast %173 : vector<4xf32> to vector<1x4xf32>
    %cst_76 = arith.constant 8.000000e+00 : f32
    %175 = vector.broadcast %cst_76 : f32 to vector<1x4xf32>
    %176 = arith.divf %174, %175 : vector<1x4xf32>
    %177 = arith.mulf %171, %171 : vector<1x4xf32>
    %178 = arith.subf %176, %177 : vector<1x4xf32>
    %179 = vector.broadcast %171 : vector<1x4xf32> to vector<8x4xf32>
    %180 = arith.subf %165, %179 : vector<8x4xf32>
    %cst_77 = arith.constant 9.99999997E-7 : f32
    %181 = vector.broadcast %cst_77 : f32 to vector<1x4xf32>
    %182 = arith.addf %178, %181 : vector<1x4xf32>
    %183 = math.rsqrt %182 : vector<1x4xf32>
    %184 = vector.broadcast %183 : vector<1x4xf32> to vector<8x4xf32>
    %185 = arith.mulf %180, %184 : vector<8x4xf32>
    %186 = vector.broadcast %166 : vector<1x4xf32> to vector<8x4xf32>
    %187 = arith.mulf %185, %186 : vector<8x4xf32>
    %188 = vector.broadcast %167 : vector<1x4xf32> to vector<8x4xf32>
    %189 = arith.addf %187, %188 : vector<8x4xf32>
    %c1_78 = arith.constant 1 : index
    %c0_79 = arith.constant 0 : index
    %c0_80 = arith.constant 0 : index
    %190 = vector.load %arg4[%c1_78, %c0_79, %c0_80] : memref<4x4x16xf32, #tpu.memory_space<vmem>>, vector<1x4x16xf32>
    %191 = vector.shape_cast %190 : vector<1x4x16xf32> to vector<4x16xf32>
    %cst_81 = arith.constant dense<0.000000e+00> : vector<8x16xf32>
    %192 = tpu.matmul %189, %191, %cst_81 {dimension_numbers = #tpu.dot_dimension_numbers<[1], [0], [0], [1], [0, 0, 1, 1], [], []>} : vector<8x4xf32>, vector<4x16xf32>, vector<8x16xf32> -> vector<8x16xf32>
    %193 = vector.extract_strided_slice %163 {offsets = [0, 0], sizes = [1, 16], strides = [1, 1]} : vector<3x16xf32> to vector<1x16xf32>
    %194 = vector.broadcast %193 : vector<1x16xf32> to vector<8x16xf32>
    %195 = arith.addf %192, %194 : vector<8x16xf32>
    %196 = vector.extract_strided_slice %159 {offsets = [1, 0], sizes = [1, 16], strides = [1, 1]} : vector<4x16xf32> to vector<1x16xf32>
    %197 = vector.extract_strided_slice %161 {offsets = [1, 0], sizes = [1, 16], strides = [1, 1]} : vector<4x16xf32> to vector<1x16xf32>
    %cst_82 = arith.constant dense<0.000000e+00> : vector<16xf32>
    %198 = vector.multi_reduction <add>, %195, %cst_82 [0] : vector<8x16xf32> to vector<16xf32>
    %199 = vector.shape_cast %198 : vector<16xf32> to vector<1x16xf32>
    %cst_83 = arith.constant 8.000000e+00 : f32
    %200 = vector.broadcast %cst_83 : f32 to vector<1x16xf32>
    %201 = arith.divf %199, %200 : vector<1x16xf32>
    %202 = arith.mulf %195, %195 : vector<8x16xf32>
    %cst_84 = arith.constant dense<0.000000e+00> : vector<16xf32>
    %203 = vector.multi_reduction <add>, %202, %cst_84 [0] : vector<8x16xf32> to vector<16xf32>
    %204 = vector.shape_cast %203 : vector<16xf32> to vector<1x16xf32>
    %cst_85 = arith.constant 8.000000e+00 : f32
    %205 = vector.broadcast %cst_85 : f32 to vector<1x16xf32>
    %206 = arith.divf %204, %205 : vector<1x16xf32>
    %207 = arith.mulf %201, %201 : vector<1x16xf32>
    %208 = arith.subf %206, %207 : vector<1x16xf32>
    %209 = vector.broadcast %201 : vector<1x16xf32> to vector<8x16xf32>
    %210 = arith.subf %195, %209 : vector<8x16xf32>
    %cst_86 = arith.constant 9.99999997E-7 : f32
    %211 = vector.broadcast %cst_86 : f32 to vector<1x16xf32>
    %212 = arith.addf %208, %211 : vector<1x16xf32>
    %213 = math.rsqrt %212 : vector<1x16xf32>
    %214 = vector.broadcast %213 : vector<1x16xf32> to vector<8x16xf32>
    %215 = arith.mulf %210, %214 : vector<8x16xf32>
    %216 = vector.broadcast %196 : vector<1x16xf32> to vector<8x16xf32>
    %217 = arith.mulf %215, %216 : vector<8x16xf32>
    %218 = vector.broadcast %197 : vector<1x16xf32> to vector<8x16xf32>
    %219 = arith.addf %217, %218 : vector<8x16xf32>
    %cst_87 = arith.constant 0.000000e+00 : f32
    %220 = vector.broadcast %cst_87 : f32 to vector<8x16xf32>
    %221 = arith.maximumf %219, %220 : vector<8x16xf32>
    %c1_88 = arith.constant 1 : index
    %c0_89 = arith.constant 0 : index
    %c0_90 = arith.constant 0 : index
    %222 = vector.load %arg5[%c1_88, %c0_89, %c0_90] : memref<4x16x16xf32, #tpu.memory_space<vmem>>, vector<1x16x16xf32>
    %223 = vector.shape_cast %222 : vector<1x16x16xf32> to vector<16x16xf32>
    %cst_91 = arith.constant dense<0.000000e+00> : vector<8x16xf32>
    %224 = tpu.matmul %221, %223, %cst_91 {dimension_numbers = #tpu.dot_dimension_numbers<[1], [0], [0], [1], [0, 0, 1, 1], [], []>} : vector<8x16xf32>, vector<16x16xf32>, vector<8x16xf32> -> vector<8x16xf32>
    %225 = vector.extract_strided_slice %163 {offsets = [1, 0], sizes = [1, 16], strides = [1, 1]} : vector<3x16xf32> to vector<1x16xf32>
    %226 = vector.broadcast %225 : vector<1x16xf32> to vector<8x16xf32>
    %227 = arith.addf %224, %226 : vector<8x16xf32>
    %228 = vector.extract_strided_slice %159 {offsets = [2, 0], sizes = [1, 16], strides = [1, 1]} : vector<4x16xf32> to vector<1x16xf32>
    %229 = vector.extract_strided_slice %161 {offsets = [2, 0], sizes = [1, 16], strides = [1, 1]} : vector<4x16xf32> to vector<1x16xf32>
    %cst_92 = arith.constant dense<0.000000e+00> : vector<16xf32>
    %230 = vector.multi_reduction <add>, %227, %cst_92 [0] : vector<8x16xf32> to vector<16xf32>
    %231 = vector.shape_cast %230 : vector<16xf32> to vector<1x16xf32>
    %cst_93 = arith.constant 8.000000e+00 : f32
    %232 = vector.broadcast %cst_93 : f32 to vector<1x16xf32>
    %233 = arith.divf %231, %232 : vector<1x16xf32>
    %234 = arith.mulf %227, %227 : vector<8x16xf32>
    %cst_94 = arith.constant dense<0.000000e+00> : vector<16xf32>
    %235 = vector.multi_reduction <add>, %234, %cst_94 [0] : vector<8x16xf32> to vector<16xf32>
    %236 = vector.shape_cast %235 : vector<16xf32> to vector<1x16xf32>
    %cst_95 = arith.constant 8.000000e+00 : f32
    %237 = vector.broadcast %cst_95 : f32 to vector<1x16xf32>
    %238 = arith.divf %236, %237 : vector<1x16xf32>
    %239 = arith.mulf %233, %233 : vector<1x16xf32>
    %240 = arith.subf %238, %239 : vector<1x16xf32>
    %241 = vector.broadcast %233 : vector<1x16xf32> to vector<8x16xf32>
    %242 = arith.subf %227, %241 : vector<8x16xf32>
    %cst_96 = arith.constant 9.99999997E-7 : f32
    %243 = vector.broadcast %cst_96 : f32 to vector<1x16xf32>
    %244 = arith.addf %240, %243 : vector<1x16xf32>
    %245 = math.rsqrt %244 : vector<1x16xf32>
    %246 = vector.broadcast %245 : vector<1x16xf32> to vector<8x16xf32>
    %247 = arith.mulf %242, %246 : vector<8x16xf32>
    %248 = vector.broadcast %228 : vector<1x16xf32> to vector<8x16xf32>
    %249 = arith.mulf %247, %248 : vector<8x16xf32>
    %250 = vector.broadcast %229 : vector<1x16xf32> to vector<8x16xf32>
    %251 = arith.addf %249, %250 : vector<8x16xf32>
    %cst_97 = arith.constant 0.000000e+00 : f32
    %252 = vector.broadcast %cst_97 : f32 to vector<8x16xf32>
    %253 = arith.maximumf %251, %252 : vector<8x16xf32>
    %c1_98 = arith.constant 1 : index
    %c0_99 = arith.constant 0 : index
    %c0_100 = arith.constant 0 : index
    %254 = vector.load %arg6[%c1_98, %c0_99, %c0_100] : memref<4x16x4xf32, #tpu.memory_space<vmem>>, vector<1x16x4xf32>
    %255 = vector.shape_cast %254 : vector<1x16x4xf32> to vector<16x4xf32>
    %cst_101 = arith.constant dense<0.000000e+00> : vector<8x4xf32>
    %256 = tpu.matmul %253, %255, %cst_101 {dimension_numbers = #tpu.dot_dimension_numbers<[1], [0], [0], [1], [0, 0, 1, 1], [], []>} : vector<8x16xf32>, vector<16x4xf32>, vector<8x4xf32> -> vector<8x4xf32>
    %257 = vector.extract_strided_slice %163 {offsets = [2, 0], sizes = [1, 4], strides = [1, 1]} : vector<3x16xf32> to vector<1x4xf32>
    %258 = vector.broadcast %257 : vector<1x4xf32> to vector<8x4xf32>
    %259 = arith.addf %256, %258 : vector<8x4xf32>
    %260 = vector.extract_strided_slice %159 {offsets = [3, 0], sizes = [1, 4], strides = [1, 1]} : vector<4x16xf32> to vector<1x4xf32>
    %261 = vector.extract_strided_slice %161 {offsets = [3, 0], sizes = [1, 4], strides = [1, 1]} : vector<4x16xf32> to vector<1x4xf32>
    %cst_102 = arith.constant dense<0.000000e+00> : vector<4xf32>
    %262 = vector.multi_reduction <add>, %259, %cst_102 [0] : vector<8x4xf32> to vector<4xf32>
    %263 = vector.shape_cast %262 : vector<4xf32> to vector<1x4xf32>
    %cst_103 = arith.constant 8.000000e+00 : f32
    %264 = vector.broadcast %cst_103 : f32 to vector<1x4xf32>
    %265 = arith.divf %263, %264 : vector<1x4xf32>
    %266 = arith.mulf %259, %259 : vector<8x4xf32>
    %cst_104 = arith.constant dense<0.000000e+00> : vector<4xf32>
    %267 = vector.multi_reduction <add>, %266, %cst_104 [0] : vector<8x4xf32> to vector<4xf32>
    %268 = vector.shape_cast %267 : vector<4xf32> to vector<1x4xf32>
    %cst_105 = arith.constant 8.000000e+00 : f32
    %269 = vector.broadcast %cst_105 : f32 to vector<1x4xf32>
    %270 = arith.divf %268, %269 : vector<1x4xf32>
    %271 = arith.mulf %265, %265 : vector<1x4xf32>
    %272 = arith.subf %270, %271 : vector<1x4xf32>
    %273 = vector.broadcast %265 : vector<1x4xf32> to vector<8x4xf32>
    %274 = arith.subf %259, %273 : vector<8x4xf32>
    %cst_106 = arith.constant 9.99999997E-7 : f32
    %275 = vector.broadcast %cst_106 : f32 to vector<1x4xf32>
    %276 = arith.addf %272, %275 : vector<1x4xf32>
    %277 = math.rsqrt %276 : vector<1x4xf32>
    %278 = vector.broadcast %277 : vector<1x4xf32> to vector<8x4xf32>
    %279 = arith.mulf %274, %278 : vector<8x4xf32>
    %280 = vector.broadcast %260 : vector<1x4xf32> to vector<8x4xf32>
    %281 = arith.mulf %279, %280 : vector<8x4xf32>
    %282 = vector.broadcast %261 : vector<1x4xf32> to vector<8x4xf32>
    %283 = arith.addf %281, %282 : vector<8x4xf32>
    %cst_107 = arith.constant 4.000000e+00 : f32
    %284 = vector.broadcast %cst_107 : f32 to vector<8x4xf32>
    %285 = arith.divf %283, %284 : vector<8x4xf32>
    %c2_108 = arith.constant 2 : index
    %c0_109 = arith.constant 0 : index
    %c0_110 = arith.constant 0 : index
    %286 = vector.load %arg0[%c2_108, %c0_109, %c0_110] : memref<5x8x4xf32, #tpu.memory_space<vmem>>, vector<1x8x4xf32>
    %287 = vector.shape_cast %286 : vector<1x8x4xf32> to vector<8x4xf32>
    %288 = arith.mulf %285, %285 : vector<8x4xf32>
    %cst_111 = arith.constant dense<0.000000e+00> : vector<8xf32>
    %289 = vector.multi_reduction <add>, %288, %cst_111 [1] : vector<8x4xf32> to vector<8xf32>
    %290 = vector.shape_cast %289 : vector<8xf32> to vector<8x1xf32>
    %cst_112 = arith.constant -1.000000e+00 : f32
    %291 = vector.broadcast %cst_112 : f32 to vector<8x1xf32>
    %292 = arith.mulf %291, %290 : vector<8x1xf32>
    %cst_113 = arith.constant 2.000000e-01 : f32
    %293 = vector.broadcast %cst_113 : f32 to vector<8x1xf32>
    %294 = arith.mulf %293, %292 : vector<8x1xf32>
    %295 = arith.subf %157, %294 : vector<8x1xf32>
    %296 = arith.mulf %285, %287 : vector<8x4xf32>
    %cst_114 = arith.constant dense<0.000000e+00> : vector<8xf32>
    %297 = vector.multi_reduction <add>, %296, %cst_114 [1] : vector<8x4xf32> to vector<8xf32>
    %298 = vector.shape_cast %297 : vector<8xf32> to vector<8x1xf32>
    %299 = arith.addf %295, %298 : vector<8x1xf32>
    %c2_115 = arith.constant 2 : index
    %c0_116 = arith.constant 0 : index
    %c0_117 = arith.constant 0 : index
    %300 = vector.load %arg8[%c2_115, %c0_116, %c0_117] : memref<4x4x16xf32, #tpu.memory_space<vmem>>, vector<1x4x16xf32>
    %301 = vector.shape_cast %300 : vector<1x4x16xf32> to vector<4x16xf32>
    %c2_118 = arith.constant 2 : index
    %c0_119 = arith.constant 0 : index
    %c0_120 = arith.constant 0 : index
    %302 = vector.load %arg9[%c2_118, %c0_119, %c0_120] : memref<4x4x16xf32, #tpu.memory_space<vmem>>, vector<1x4x16xf32>
    %303 = vector.shape_cast %302 : vector<1x4x16xf32> to vector<4x16xf32>
    %c2_121 = arith.constant 2 : index
    %c0_122 = arith.constant 0 : index
    %c0_123 = arith.constant 0 : index
    %304 = vector.load %arg7[%c2_121, %c0_122, %c0_123] : memref<4x3x16xf32, #tpu.memory_space<vmem>>, vector<1x3x16xf32>
    %305 = vector.shape_cast %304 : vector<1x3x16xf32> to vector<3x16xf32>
    %c3 = arith.constant 3 : index
    %c0_124 = arith.constant 0 : index
    %c0_125 = arith.constant 0 : index
    %306 = vector.load %arg1[%c3, %c0_124, %c0_125] : memref<6x8x4xf32, #tpu.memory_space<vmem>>, vector<1x8x4xf32>
    %307 = vector.shape_cast %306 : vector<1x8x4xf32> to vector<8x4xf32>
    %308 = vector.extract_strided_slice %301 {offsets = [0, 0], sizes = [1, 4], strides = [1, 1]} : vector<4x16xf32> to vector<1x4xf32>
    %309 = vector.extract_strided_slice %303 {offsets = [0, 0], sizes = [1, 4], strides = [1, 1]} : vector<4x16xf32> to vector<1x4xf32>
    %cst_126 = arith.constant dense<0.000000e+00> : vector<4xf32>
    %310 = vector.multi_reduction <add>, %307, %cst_126 [0] : vector<8x4xf32> to vector<4xf32>
    %311 = vector.shape_cast %310 : vector<4xf32> to vector<1x4xf32>
    %cst_127 = arith.constant 8.000000e+00 : f32
    %312 = vector.broadcast %cst_127 : f32 to vector<1x4xf32>
    %313 = arith.divf %311, %312 : vector<1x4xf32>
    %314 = arith.mulf %307, %307 : vector<8x4xf32>
    %cst_128 = arith.constant dense<0.000000e+00> : vector<4xf32>
    %315 = vector.multi_reduction <add>, %314, %cst_128 [0] : vector<8x4xf32> to vector<4xf32>
    %316 = vector.shape_cast %315 : vector<4xf32> to vector<1x4xf32>
    %cst_129 = arith.constant 8.000000e+00 : f32
    %317 = vector.broadcast %cst_129 : f32 to vector<1x4xf32>
    %318 = arith.divf %316, %317 : vector<1x4xf32>
    %319 = arith.mulf %313, %313 : vector<1x4xf32>
    %320 = arith.subf %318, %319 : vector<1x4xf32>
    %321 = vector.broadcast %313 : vector<1x4xf32> to vector<8x4xf32>
    %322 = arith.subf %307, %321 : vector<8x4xf32>
    %cst_130 = arith.constant 9.99999997E-7 : f32
    %323 = vector.broadcast %cst_130 : f32 to vector<1x4xf32>
    %324 = arith.addf %320, %323 : vector<1x4xf32>
    %325 = math.rsqrt %324 : vector<1x4xf32>
    %326 = vector.broadcast %325 : vector<1x4xf32> to vector<8x4xf32>
    %327 = arith.mulf %322, %326 : vector<8x4xf32>
    %328 = vector.broadcast %308 : vector<1x4xf32> to vector<8x4xf32>
    %329 = arith.mulf %327, %328 : vector<8x4xf32>
    %330 = vector.broadcast %309 : vector<1x4xf32> to vector<8x4xf32>
    %331 = arith.addf %329, %330 : vector<8x4xf32>
    %c2_131 = arith.constant 2 : index
    %c0_132 = arith.constant 0 : index
    %c0_133 = arith.constant 0 : index
    %332 = vector.load %arg4[%c2_131, %c0_132, %c0_133] : memref<4x4x16xf32, #tpu.memory_space<vmem>>, vector<1x4x16xf32>
    %333 = vector.shape_cast %332 : vector<1x4x16xf32> to vector<4x16xf32>
    %cst_134 = arith.constant dense<0.000000e+00> : vector<8x16xf32>
    %334 = tpu.matmul %331, %333, %cst_134 {dimension_numbers = #tpu.dot_dimension_numbers<[1], [0], [0], [1], [0, 0, 1, 1], [], []>} : vector<8x4xf32>, vector<4x16xf32>, vector<8x16xf32> -> vector<8x16xf32>
    %335 = vector.extract_strided_slice %305 {offsets = [0, 0], sizes = [1, 16], strides = [1, 1]} : vector<3x16xf32> to vector<1x16xf32>
    %336 = vector.broadcast %335 : vector<1x16xf32> to vector<8x16xf32>
    %337 = arith.addf %334, %336 : vector<8x16xf32>
    %338 = vector.extract_strided_slice %301 {offsets = [1, 0], sizes = [1, 16], strides = [1, 1]} : vector<4x16xf32> to vector<1x16xf32>
    %339 = vector.extract_strided_slice %303 {offsets = [1, 0], sizes = [1, 16], strides = [1, 1]} : vector<4x16xf32> to vector<1x16xf32>
    %cst_135 = arith.constant dense<0.000000e+00> : vector<16xf32>
    %340 = vector.multi_reduction <add>, %337, %cst_135 [0] : vector<8x16xf32> to vector<16xf32>
    %341 = vector.shape_cast %340 : vector<16xf32> to vector<1x16xf32>
    %cst_136 = arith.constant 8.000000e+00 : f32
    %342 = vector.broadcast %cst_136 : f32 to vector<1x16xf32>
    %343 = arith.divf %341, %342 : vector<1x16xf32>
    %344 = arith.mulf %337, %337 : vector<8x16xf32>
    %cst_137 = arith.constant dense<0.000000e+00> : vector<16xf32>
    %345 = vector.multi_reduction <add>, %344, %cst_137 [0] : vector<8x16xf32> to vector<16xf32>
    %346 = vector.shape_cast %345 : vector<16xf32> to vector<1x16xf32>
    %cst_138 = arith.constant 8.000000e+00 : f32
    %347 = vector.broadcast %cst_138 : f32 to vector<1x16xf32>
    %348 = arith.divf %346, %347 : vector<1x16xf32>
    %349 = arith.mulf %343, %343 : vector<1x16xf32>
    %350 = arith.subf %348, %349 : vector<1x16xf32>
    %351 = vector.broadcast %343 : vector<1x16xf32> to vector<8x16xf32>
    %352 = arith.subf %337, %351 : vector<8x16xf32>
    %cst_139 = arith.constant 9.99999997E-7 : f32
    %353 = vector.broadcast %cst_139 : f32 to vector<1x16xf32>
    %354 = arith.addf %350, %353 : vector<1x16xf32>
    %355 = math.rsqrt %354 : vector<1x16xf32>
    %356 = vector.broadcast %355 : vector<1x16xf32> to vector<8x16xf32>
    %357 = arith.mulf %352, %356 : vector<8x16xf32>
    %358 = vector.broadcast %338 : vector<1x16xf32> to vector<8x16xf32>
    %359 = arith.mulf %357, %358 : vector<8x16xf32>
    %360 = vector.broadcast %339 : vector<1x16xf32> to vector<8x16xf32>
    %361 = arith.addf %359, %360 : vector<8x16xf32>
    %cst_140 = arith.constant 0.000000e+00 : f32
    %362 = vector.broadcast %cst_140 : f32 to vector<8x16xf32>
    %363 = arith.maximumf %361, %362 : vector<8x16xf32>
    %c2_141 = arith.constant 2 : index
    %c0_142 = arith.constant 0 : index
    %c0_143 = arith.constant 0 : index
    %364 = vector.load %arg5[%c2_141, %c0_142, %c0_143] : memref<4x16x16xf32, #tpu.memory_space<vmem>>, vector<1x16x16xf32>
    %365 = vector.shape_cast %364 : vector<1x16x16xf32> to vector<16x16xf32>
    %cst_144 = arith.constant dense<0.000000e+00> : vector<8x16xf32>
    %366 = tpu.matmul %363, %365, %cst_144 {dimension_numbers = #tpu.dot_dimension_numbers<[1], [0], [0], [1], [0, 0, 1, 1], [], []>} : vector<8x16xf32>, vector<16x16xf32>, vector<8x16xf32> -> vector<8x16xf32>
    %367 = vector.extract_strided_slice %305 {offsets = [1, 0], sizes = [1, 16], strides = [1, 1]} : vector<3x16xf32> to vector<1x16xf32>
    %368 = vector.broadcast %367 : vector<1x16xf32> to vector<8x16xf32>
    %369 = arith.addf %366, %368 : vector<8x16xf32>
    %370 = vector.extract_strided_slice %301 {offsets = [2, 0], sizes = [1, 16], strides = [1, 1]} : vector<4x16xf32> to vector<1x16xf32>
    %371 = vector.extract_strided_slice %303 {offsets = [2, 0], sizes = [1, 16], strides = [1, 1]} : vector<4x16xf32> to vector<1x16xf32>
    %cst_145 = arith.constant dense<0.000000e+00> : vector<16xf32>
    %372 = vector.multi_reduction <add>, %369, %cst_145 [0] : vector<8x16xf32> to vector<16xf32>
    %373 = vector.shape_cast %372 : vector<16xf32> to vector<1x16xf32>
    %cst_146 = arith.constant 8.000000e+00 : f32
    %374 = vector.broadcast %cst_146 : f32 to vector<1x16xf32>
    %375 = arith.divf %373, %374 : vector<1x16xf32>
    %376 = arith.mulf %369, %369 : vector<8x16xf32>
    %cst_147 = arith.constant dense<0.000000e+00> : vector<16xf32>
    %377 = vector.multi_reduction <add>, %376, %cst_147 [0] : vector<8x16xf32> to vector<16xf32>
    %378 = vector.shape_cast %377 : vector<16xf32> to vector<1x16xf32>
    %cst_148 = arith.constant 8.000000e+00 : f32
    %379 = vector.broadcast %cst_148 : f32 to vector<1x16xf32>
    %380 = arith.divf %378, %379 : vector<1x16xf32>
    %381 = arith.mulf %375, %375 : vector<1x16xf32>
    %382 = arith.subf %380, %381 : vector<1x16xf32>
    %383 = vector.broadcast %375 : vector<1x16xf32> to vector<8x16xf32>
    %384 = arith.subf %369, %383 : vector<8x16xf32>
    %cst_149 = arith.constant 9.99999997E-7 : f32
    %385 = vector.broadcast %cst_149 : f32 to vector<1x16xf32>
    %386 = arith.addf %382, %385 : vector<1x16xf32>
    %387 = math.rsqrt %386 : vector<1x16xf32>
    %388 = vector.broadcast %387 : vector<1x16xf32> to vector<8x16xf32>
    %389 = arith.mulf %384, %388 : vector<8x16xf32>
    %390 = vector.broadcast %370 : vector<1x16xf32> to vector<8x16xf32>
    %391 = arith.mulf %389, %390 : vector<8x16xf32>
    %392 = vector.broadcast %371 : vector<1x16xf32> to vector<8x16xf32>
    %393 = arith.addf %391, %392 : vector<8x16xf32>
    %cst_150 = arith.constant 0.000000e+00 : f32
    %394 = vector.broadcast %cst_150 : f32 to vector<8x16xf32>
    %395 = arith.maximumf %393, %394 : vector<8x16xf32>
    %c2_151 = arith.constant 2 : index
    %c0_152 = arith.constant 0 : index
    %c0_153 = arith.constant 0 : index
    %396 = vector.load %arg6[%c2_151, %c0_152, %c0_153] : memref<4x16x4xf32, #tpu.memory_space<vmem>>, vector<1x16x4xf32>
    %397 = vector.shape_cast %396 : vector<1x16x4xf32> to vector<16x4xf32>
    %cst_154 = arith.constant dense<0.000000e+00> : vector<8x4xf32>
    %398 = tpu.matmul %395, %397, %cst_154 {dimension_numbers = #tpu.dot_dimension_numbers<[1], [0], [0], [1], [0, 0, 1, 1], [], []>} : vector<8x16xf32>, vector<16x4xf32>, vector<8x4xf32> -> vector<8x4xf32>
    %399 = vector.extract_strided_slice %305 {offsets = [2, 0], sizes = [1, 4], strides = [1, 1]} : vector<3x16xf32> to vector<1x4xf32>
    %400 = vector.broadcast %399 : vector<1x4xf32> to vector<8x4xf32>
    %401 = arith.addf %398, %400 : vector<8x4xf32>
    %402 = vector.extract_strided_slice %301 {offsets = [3, 0], sizes = [1, 4], strides = [1, 1]} : vector<4x16xf32> to vector<1x4xf32>
    %403 = vector.extract_strided_slice %303 {offsets = [3, 0], sizes = [1, 4], strides = [1, 1]} : vector<4x16xf32> to vector<1x4xf32>
    %cst_155 = arith.constant dense<0.000000e+00> : vector<4xf32>
    %404 = vector.multi_reduction <add>, %401, %cst_155 [0] : vector<8x4xf32> to vector<4xf32>
    %405 = vector.shape_cast %404 : vector<4xf32> to vector<1x4xf32>
    %cst_156 = arith.constant 8.000000e+00 : f32
    %406 = vector.broadcast %cst_156 : f32 to vector<1x4xf32>
    %407 = arith.divf %405, %406 : vector<1x4xf32>
    %408 = arith.mulf %401, %401 : vector<8x4xf32>
    %cst_157 = arith.constant dense<0.000000e+00> : vector<4xf32>
    %409 = vector.multi_reduction <add>, %408, %cst_157 [0] : vector<8x4xf32> to vector<4xf32>
    %410 = vector.shape_cast %409 : vector<4xf32> to vector<1x4xf32>
    %cst_158 = arith.constant 8.000000e+00 : f32
    %411 = vector.broadcast %cst_158 : f32 to vector<1x4xf32>
    %412 = arith.divf %410, %411 : vector<1x4xf32>
    %413 = arith.mulf %407, %407 : vector<1x4xf32>
    %414 = arith.subf %412, %413 : vector<1x4xf32>
    %415 = vector.broadcast %407 : vector<1x4xf32> to vector<8x4xf32>
    %416 = arith.subf %401, %415 : vector<8x4xf32>
    %cst_159 = arith.constant 9.99999997E-7 : f32
    %417 = vector.broadcast %cst_159 : f32 to vector<1x4xf32>
    %418 = arith.addf %414, %417 : vector<1x4xf32>
    %419 = math.rsqrt %418 : vector<1x4xf32>
    %420 = vector.broadcast %419 : vector<1x4xf32> to vector<8x4xf32>
    %421 = arith.mulf %416, %420 : vector<8x4xf32>
    %422 = vector.broadcast %402 : vector<1x4xf32> to vector<8x4xf32>
    %423 = arith.mulf %421, %422 : vector<8x4xf32>
    %424 = vector.broadcast %403 : vector<1x4xf32> to vector<8x4xf32>
    %425 = arith.addf %423, %424 : vector<8x4xf32>
    %cst_160 = arith.constant 4.000000e+00 : f32
    %426 = vector.broadcast %cst_160 : f32 to vector<8x4xf32>
    %427 = arith.divf %425, %426 : vector<8x4xf32>
    %c3_161 = arith.constant 3 : index
    %c0_162 = arith.constant 0 : index
    %c0_163 = arith.constant 0 : index
    %428 = vector.load %arg0[%c3_161, %c0_162, %c0_163] : memref<5x8x4xf32, #tpu.memory_space<vmem>>, vector<1x8x4xf32>
    %429 = vector.shape_cast %428 : vector<1x8x4xf32> to vector<8x4xf32>
    %430 = arith.mulf %427, %427 : vector<8x4xf32>
    %cst_164 = arith.constant dense<0.000000e+00> : vector<8xf32>
    %431 = vector.multi_reduction <add>, %430, %cst_164 [1] : vector<8x4xf32> to vector<8xf32>
    %432 = vector.shape_cast %431 : vector<8xf32> to vector<8x1xf32>
    %cst_165 = arith.constant -1.000000e+00 : f32
    %433 = vector.broadcast %cst_165 : f32 to vector<8x1xf32>
    %434 = arith.mulf %433, %432 : vector<8x1xf32>
    %cst_166 = arith.constant 2.000000e-01 : f32
    %435 = vector.broadcast %cst_166 : f32 to vector<8x1xf32>
    %436 = arith.mulf %435, %434 : vector<8x1xf32>
    %437 = arith.subf %299, %436 : vector<8x1xf32>
    %438 = arith.mulf %427, %429 : vector<8x4xf32>
    %cst_167 = arith.constant dense<0.000000e+00> : vector<8xf32>
    %439 = vector.multi_reduction <add>, %438, %cst_167 [1] : vector<8x4xf32> to vector<8xf32>
    %440 = vector.shape_cast %439 : vector<8xf32> to vector<8x1xf32>
    %441 = arith.addf %437, %440 : vector<8x1xf32>
    %c3_168 = arith.constant 3 : index
    %c0_169 = arith.constant 0 : index
    %c0_170 = arith.constant 0 : index
    %442 = vector.load %arg8[%c3_168, %c0_169, %c0_170] : memref<4x4x16xf32, #tpu.memory_space<vmem>>, vector<1x4x16xf32>
    %443 = vector.shape_cast %442 : vector<1x4x16xf32> to vector<4x16xf32>
    %c3_171 = arith.constant 3 : index
    %c0_172 = arith.constant 0 : index
    %c0_173 = arith.constant 0 : index
    %444 = vector.load %arg9[%c3_171, %c0_172, %c0_173] : memref<4x4x16xf32, #tpu.memory_space<vmem>>, vector<1x4x16xf32>
    %445 = vector.shape_cast %444 : vector<1x4x16xf32> to vector<4x16xf32>
    %c3_174 = arith.constant 3 : index
    %c0_175 = arith.constant 0 : index
    %c0_176 = arith.constant 0 : index
    %446 = vector.load %arg7[%c3_174, %c0_175, %c0_176] : memref<4x3x16xf32, #tpu.memory_space<vmem>>, vector<1x3x16xf32>
    %447 = vector.shape_cast %446 : vector<1x3x16xf32> to vector<3x16xf32>
    %c4 = arith.constant 4 : index
    %c0_177 = arith.constant 0 : index
    %c0_178 = arith.constant 0 : index
    %448 = vector.load %arg1[%c4, %c0_177, %c0_178] : memref<6x8x4xf32, #tpu.memory_space<vmem>>, vector<1x8x4xf32>
    %449 = vector.shape_cast %448 : vector<1x8x4xf32> to vector<8x4xf32>
    %450 = vector.extract_strided_slice %443 {offsets = [0, 0], sizes = [1, 4], strides = [1, 1]} : vector<4x16xf32> to vector<1x4xf32>
    %451 = vector.extract_strided_slice %445 {offsets = [0, 0], sizes = [1, 4], strides = [1, 1]} : vector<4x16xf32> to vector<1x4xf32>
    %cst_179 = arith.constant dense<0.000000e+00> : vector<4xf32>
    %452 = vector.multi_reduction <add>, %449, %cst_179 [0] : vector<8x4xf32> to vector<4xf32>
    %453 = vector.shape_cast %452 : vector<4xf32> to vector<1x4xf32>
    %cst_180 = arith.constant 8.000000e+00 : f32
    %454 = vector.broadcast %cst_180 : f32 to vector<1x4xf32>
    %455 = arith.divf %453, %454 : vector<1x4xf32>
    %456 = arith.mulf %449, %449 : vector<8x4xf32>
    %cst_181 = arith.constant dense<0.000000e+00> : vector<4xf32>
    %457 = vector.multi_reduction <add>, %456, %cst_181 [0] : vector<8x4xf32> to vector<4xf32>
    %458 = vector.shape_cast %457 : vector<4xf32> to vector<1x4xf32>
    %cst_182 = arith.constant 8.000000e+00 : f32
    %459 = vector.broadcast %cst_182 : f32 to vector<1x4xf32>
    %460 = arith.divf %458, %459 : vector<1x4xf32>
    %461 = arith.mulf %455, %455 : vector<1x4xf32>
    %462 = arith.subf %460, %461 : vector<1x4xf32>
    %463 = vector.broadcast %455 : vector<1x4xf32> to vector<8x4xf32>
    %464 = arith.subf %449, %463 : vector<8x4xf32>
    %cst_183 = arith.constant 9.99999997E-7 : f32
    %465 = vector.broadcast %cst_183 : f32 to vector<1x4xf32>
    %466 = arith.addf %462, %465 : vector<1x4xf32>
    %467 = math.rsqrt %466 : vector<1x4xf32>
    %468 = vector.broadcast %467 : vector<1x4xf32> to vector<8x4xf32>
    %469 = arith.mulf %464, %468 : vector<8x4xf32>
    %470 = vector.broadcast %450 : vector<1x4xf32> to vector<8x4xf32>
    %471 = arith.mulf %469, %470 : vector<8x4xf32>
    %472 = vector.broadcast %451 : vector<1x4xf32> to vector<8x4xf32>
    %473 = arith.addf %471, %472 : vector<8x4xf32>
    %c3_184 = arith.constant 3 : index
    %c0_185 = arith.constant 0 : index
    %c0_186 = arith.constant 0 : index
    %474 = vector.load %arg4[%c3_184, %c0_185, %c0_186] : memref<4x4x16xf32, #tpu.memory_space<vmem>>, vector<1x4x16xf32>
    %475 = vector.shape_cast %474 : vector<1x4x16xf32> to vector<4x16xf32>
    %cst_187 = arith.constant dense<0.000000e+00> : vector<8x16xf32>
    %476 = tpu.matmul %473, %475, %cst_187 {dimension_numbers = #tpu.dot_dimension_numbers<[1], [0], [0], [1], [0, 0, 1, 1], [], []>} : vector<8x4xf32>, vector<4x16xf32>, vector<8x16xf32> -> vector<8x16xf32>
    %477 = vector.extract_strided_slice %447 {offsets = [0, 0], sizes = [1, 16], strides = [1, 1]} : vector<3x16xf32> to vector<1x16xf32>
    %478 = vector.broadcast %477 : vector<1x16xf32> to vector<8x16xf32>
    %479 = arith.addf %476, %478 : vector<8x16xf32>
    %480 = vector.extract_strided_slice %443 {offsets = [1, 0], sizes = [1, 16], strides = [1, 1]} : vector<4x16xf32> to vector<1x16xf32>
    %481 = vector.extract_strided_slice %445 {offsets = [1, 0], sizes = [1, 16], strides = [1, 1]} : vector<4x16xf32> to vector<1x16xf32>
    %cst_188 = arith.constant dense<0.000000e+00> : vector<16xf32>
    %482 = vector.multi_reduction <add>, %479, %cst_188 [0] : vector<8x16xf32> to vector<16xf32>
    %483 = vector.shape_cast %482 : vector<16xf32> to vector<1x16xf32>
    %cst_189 = arith.constant 8.000000e+00 : f32
    %484 = vector.broadcast %cst_189 : f32 to vector<1x16xf32>
    %485 = arith.divf %483, %484 : vector<1x16xf32>
    %486 = arith.mulf %479, %479 : vector<8x16xf32>
    %cst_190 = arith.constant dense<0.000000e+00> : vector<16xf32>
    %487 = vector.multi_reduction <add>, %486, %cst_190 [0] : vector<8x16xf32> to vector<16xf32>
    %488 = vector.shape_cast %487 : vector<16xf32> to vector<1x16xf32>
    %cst_191 = arith.constant 8.000000e+00 : f32
    %489 = vector.broadcast %cst_191 : f32 to vector<1x16xf32>
    %490 = arith.divf %488, %489 : vector<1x16xf32>
    %491 = arith.mulf %485, %485 : vector<1x16xf32>
    %492 = arith.subf %490, %491 : vector<1x16xf32>
    %493 = vector.broadcast %485 : vector<1x16xf32> to vector<8x16xf32>
    %494 = arith.subf %479, %493 : vector<8x16xf32>
    %cst_192 = arith.constant 9.99999997E-7 : f32
    %495 = vector.broadcast %cst_192 : f32 to vector<1x16xf32>
    %496 = arith.addf %492, %495 : vector<1x16xf32>
    %497 = math.rsqrt %496 : vector<1x16xf32>
    %498 = vector.broadcast %497 : vector<1x16xf32> to vector<8x16xf32>
    %499 = arith.mulf %494, %498 : vector<8x16xf32>
    %500 = vector.broadcast %480 : vector<1x16xf32> to vector<8x16xf32>
    %501 = arith.mulf %499, %500 : vector<8x16xf32>
    %502 = vector.broadcast %481 : vector<1x16xf32> to vector<8x16xf32>
    %503 = arith.addf %501, %502 : vector<8x16xf32>
    %cst_193 = arith.constant 0.000000e+00 : f32
    %504 = vector.broadcast %cst_193 : f32 to vector<8x16xf32>
    %505 = arith.maximumf %503, %504 : vector<8x16xf32>
    %c3_194 = arith.constant 3 : index
    %c0_195 = arith.constant 0 : index
    %c0_196 = arith.constant 0 : index
    %506 = vector.load %arg5[%c3_194, %c0_195, %c0_196] : memref<4x16x16xf32, #tpu.memory_space<vmem>>, vector<1x16x16xf32>
    %507 = vector.shape_cast %506 : vector<1x16x16xf32> to vector<16x16xf32>
    %cst_197 = arith.constant dense<0.000000e+00> : vector<8x16xf32>
    %508 = tpu.matmul %505, %507, %cst_197 {dimension_numbers = #tpu.dot_dimension_numbers<[1], [0], [0], [1], [0, 0, 1, 1], [], []>} : vector<8x16xf32>, vector<16x16xf32>, vector<8x16xf32> -> vector<8x16xf32>
    %509 = vector.extract_strided_slice %447 {offsets = [1, 0], sizes = [1, 16], strides = [1, 1]} : vector<3x16xf32> to vector<1x16xf32>
    %510 = vector.broadcast %509 : vector<1x16xf32> to vector<8x16xf32>
    %511 = arith.addf %508, %510 : vector<8x16xf32>
    %512 = vector.extract_strided_slice %443 {offsets = [2, 0], sizes = [1, 16], strides = [1, 1]} : vector<4x16xf32> to vector<1x16xf32>
    %513 = vector.extract_strided_slice %445 {offsets = [2, 0], sizes = [1, 16], strides = [1, 1]} : vector<4x16xf32> to vector<1x16xf32>
    %cst_198 = arith.constant dense<0.000000e+00> : vector<16xf32>
    %514 = vector.multi_reduction <add>, %511, %cst_198 [0] : vector<8x16xf32> to vector<16xf32>
    %515 = vector.shape_cast %514 : vector<16xf32> to vector<1x16xf32>
    %cst_199 = arith.constant 8.000000e+00 : f32
    %516 = vector.broadcast %cst_199 : f32 to vector<1x16xf32>
    %517 = arith.divf %515, %516 : vector<1x16xf32>
    %518 = arith.mulf %511, %511 : vector<8x16xf32>
    %cst_200 = arith.constant dense<0.000000e+00> : vector<16xf32>
    %519 = vector.multi_reduction <add>, %518, %cst_200 [0] : vector<8x16xf32> to vector<16xf32>
    %520 = vector.shape_cast %519 : vector<16xf32> to vector<1x16xf32>
    %cst_201 = arith.constant 8.000000e+00 : f32
    %521 = vector.broadcast %cst_201 : f32 to vector<1x16xf32>
    %522 = arith.divf %520, %521 : vector<1x16xf32>
    %523 = arith.mulf %517, %517 : vector<1x16xf32>
    %524 = arith.subf %522, %523 : vector<1x16xf32>
    %525 = vector.broadcast %517 : vector<1x16xf32> to vector<8x16xf32>
    %526 = arith.subf %511, %525 : vector<8x16xf32>
    %cst_202 = arith.constant 9.99999997E-7 : f32
    %527 = vector.broadcast %cst_202 : f32 to vector<1x16xf32>
    %528 = arith.addf %524, %527 : vector<1x16xf32>
    %529 = math.rsqrt %528 : vector<1x16xf32>
    %530 = vector.broadcast %529 : vector<1x16xf32> to vector<8x16xf32>
    %531 = arith.mulf %526, %530 : vector<8x16xf32>
    %532 = vector.broadcast %512 : vector<1x16xf32> to vector<8x16xf32>
    %533 = arith.mulf %531, %532 : vector<8x16xf32>
    %534 = vector.broadcast %513 : vector<1x16xf32> to vector<8x16xf32>
    %535 = arith.addf %533, %534 : vector<8x16xf32>
    %cst_203 = arith.constant 0.000000e+00 : f32
    %536 = vector.broadcast %cst_203 : f32 to vector<8x16xf32>
    %537 = arith.maximumf %535, %536 : vector<8x16xf32>
    %c3_204 = arith.constant 3 : index
    %c0_205 = arith.constant 0 : index
    %c0_206 = arith.constant 0 : index
    %538 = vector.load %arg6[%c3_204, %c0_205, %c0_206] : memref<4x16x4xf32, #tpu.memory_space<vmem>>, vector<1x16x4xf32>
    %539 = vector.shape_cast %538 : vector<1x16x4xf32> to vector<16x4xf32>
    %cst_207 = arith.constant dense<0.000000e+00> : vector<8x4xf32>
    %540 = tpu.matmul %537, %539, %cst_207 {dimension_numbers = #tpu.dot_dimension_numbers<[1], [0], [0], [1], [0, 0, 1, 1], [], []>} : vector<8x16xf32>, vector<16x4xf32>, vector<8x4xf32> -> vector<8x4xf32>
    %541 = vector.extract_strided_slice %447 {offsets = [2, 0], sizes = [1, 4], strides = [1, 1]} : vector<3x16xf32> to vector<1x4xf32>
    %542 = vector.broadcast %541 : vector<1x4xf32> to vector<8x4xf32>
    %543 = arith.addf %540, %542 : vector<8x4xf32>
    %544 = vector.extract_strided_slice %443 {offsets = [3, 0], sizes = [1, 4], strides = [1, 1]} : vector<4x16xf32> to vector<1x4xf32>
    %545 = vector.extract_strided_slice %445 {offsets = [3, 0], sizes = [1, 4], strides = [1, 1]} : vector<4x16xf32> to vector<1x4xf32>
    %cst_208 = arith.constant dense<0.000000e+00> : vector<4xf32>
    %546 = vector.multi_reduction <add>, %543, %cst_208 [0] : vector<8x4xf32> to vector<4xf32>
    %547 = vector.shape_cast %546 : vector<4xf32> to vector<1x4xf32>
    %cst_209 = arith.constant 8.000000e+00 : f32
    %548 = vector.broadcast %cst_209 : f32 to vector<1x4xf32>
    %549 = arith.divf %547, %548 : vector<1x4xf32>
    %550 = arith.mulf %543, %543 : vector<8x4xf32>
    %cst_210 = arith.constant dense<0.000000e+00> : vector<4xf32>
    %551 = vector.multi_reduction <add>, %550, %cst_210 [0] : vector<8x4xf32> to vector<4xf32>
    %552 = vector.shape_cast %551 : vector<4xf32> to vector<1x4xf32>
    %cst_211 = arith.constant 8.000000e+00 : f32
    %553 = vector.broadcast %cst_211 : f32 to vector<1x4xf32>
    %554 = arith.divf %552, %553 : vector<1x4xf32>
    %555 = arith.mulf %549, %549 : vector<1x4xf32>
    %556 = arith.subf %554, %555 : vector<1x4xf32>
    %557 = vector.broadcast %549 : vector<1x4xf32> to vector<8x4xf32>
    %558 = arith.subf %543, %557 : vector<8x4xf32>
    %cst_212 = arith.constant 9.99999997E-7 : f32
    %559 = vector.broadcast %cst_212 : f32 to vector<1x4xf32>
    %560 = arith.addf %556, %559 : vector<1x4xf32>
    %561 = math.rsqrt %560 : vector<1x4xf32>
    %562 = vector.broadcast %561 : vector<1x4xf32> to vector<8x4xf32>
    %563 = arith.mulf %558, %562 : vector<8x4xf32>
    %564 = vector.broadcast %544 : vector<1x4xf32> to vector<8x4xf32>
    %565 = arith.mulf %563, %564 : vector<8x4xf32>
    %566 = vector.broadcast %545 : vector<1x4xf32> to vector<8x4xf32>
    %567 = arith.addf %565, %566 : vector<8x4xf32>
    %cst_213 = arith.constant 4.000000e+00 : f32
    %568 = vector.broadcast %cst_213 : f32 to vector<8x4xf32>
    %569 = arith.divf %567, %568 : vector<8x4xf32>
    %c4_214 = arith.constant 4 : index
    %c0_215 = arith.constant 0 : index
    %c0_216 = arith.constant 0 : index
    %570 = vector.load %arg0[%c4_214, %c0_215, %c0_216] : memref<5x8x4xf32, #tpu.memory_space<vmem>>, vector<1x8x4xf32>
    %571 = vector.shape_cast %570 : vector<1x8x4xf32> to vector<8x4xf32>
    %572 = arith.mulf %569, %569 : vector<8x4xf32>
    %cst_217 = arith.constant dense<0.000000e+00> : vector<8xf32>
    %573 = vector.multi_reduction <add>, %572, %cst_217 [1] : vector<8x4xf32> to vector<8xf32>
    %574 = vector.shape_cast %573 : vector<8xf32> to vector<8x1xf32>
    %cst_218 = arith.constant -1.000000e+00 : f32
    %575 = vector.broadcast %cst_218 : f32 to vector<8x1xf32>
    %576 = arith.mulf %575, %574 : vector<8x1xf32>
    %cst_219 = arith.constant 2.000000e-01 : f32
    %577 = vector.broadcast %cst_219 : f32 to vector<8x1xf32>
    %578 = arith.mulf %577, %576 : vector<8x1xf32>
    %579 = arith.subf %441, %578 : vector<8x1xf32>
    %580 = arith.mulf %569, %571 : vector<8x4xf32>
    %cst_220 = arith.constant dense<0.000000e+00> : vector<8xf32>
    %581 = vector.multi_reduction <add>, %580, %cst_220 [1] : vector<8x4xf32> to vector<8xf32>
    %582 = vector.shape_cast %581 : vector<8xf32> to vector<8x1xf32>
    %583 = arith.addf %579, %582 : vector<8x1xf32>
    %c0_221 = arith.constant 0 : index
    %c0_222 = arith.constant 0 : index
    %584 = vector.load %arg10[%c0_221, %c0_222] : memref<8x1xf32, #tpu.memory_space<vmem>>, vector<8x1xf32>
    tpu.vector_store %arg10[%c0_221, %c0_222], %583 {strides = array<i32>} : memref<8x1xf32, #tpu.memory_space<vmem>>, vector<8x1xf32>,
    return
  }
}

</mosaic_0001>

<llo_original>
// kernel: mul.5
$region0: #{mul.5}
  #allocation0 [shape = 's32[1]{0}', space=sflag, size = 0x4, scoped, tag = 'scoped memory for mul.5']
  %s0 = inlined_call_operand.<no memory space> [shape: f32[], index: 0, kind: input, shape index: {}]
  %s1 = inlined_call_operand.vmem [shape: f32[8,1], index: 1, kind: output, shape index: {}]
  %v2 = vstv %s0
  %3 = vst [vmem:[%s1] sm:$0xff] %v2

// kernel: nonshared_model_forward.1
$region0: #{nonshared_model_forward.1}
  #allocation0 [shape = 'u32[]', space=smem, size = 0x4, offset = 0x4, fixed_abs, tag = 'smem constant byte address 0x4 - core index']
  #allocation1 [shape = 'u32[144,128]{1,0:T(1,128)}', space=vmem, size = 0x12000, scoped, tag = 'internal scratch']
  %s0 = inlined_call_operand.vmem [shape: f32[5,8,4], index: 0, kind: input, shape index: {}]
  %s1 = inlined_call_operand.vmem [shape: f32[6,8,4], index: 1, kind: input, shape index: {}]
  %s2 = inlined_call_operand.vmem [shape: f32[8,1], index: 2, kind: input, shape index: {}]
  %s3 = inlined_call_operand.vmem [shape: f32[8,4], index: 3, kind: input, shape index: {}]
  %s4 = inlined_call_operand.vmem [shape: f32[4,4,16], index: 4, kind: input, shape index: {}]
  %s5 = inlined_call_operand.vmem [shape: f32[4,16,16], index: 5, kind: input, shape index: {}]
  %s6 = inlined_call_operand.vmem [shape: f32[4,16,4], index: 6, kind: input, shape index: {}]
  %s7 = inlined_call_operand.vmem [shape: f32[4,3,16], index: 7, kind: input, shape index: {}]
  %s8 = inlined_call_operand.vmem [shape: f32[4,4,16], index: 8, kind: input, shape index: {}]
  %s9 = inlined_call_operand.vmem [shape: f32[4,4,16], index: 9, kind: input, shape index: {}]
  %s10 = inlined_call_operand.vmem [shape: f32[8,1], index: 10, kind: output, shape index: {}]
  %s11 = sld [smem:[#allocation0]]
  $region50: #{nonshared_model_forward.1} parent=0
    _
  %s13 = ssub.s32 1, %s11
  %s14 = scalar_select 0, %s13, %s11
  // Predicated region
  $region2: #{nonshared_model_forward.1} parent=0 // pred_check
    _
  $region3: #{nonshared_model_forward.1} parent=0 // pred_check_branch
    %16 = sbr.rel (0) target = $region5
  $region4: #{nonshared_model_forward.1} parent=0 // pred_region
    _
  $region5: #{nonshared_model_forward.1} parent=0 // pred_fallthru
    _
  // Predicated region
  $region6: #{nonshared_model_forward.1} parent=0 // pred_check
    _
  $region7: #{nonshared_model_forward.1} parent=0 // pred_check_branch
    %18 = sbr.rel (0) target = $region9
  $region8: #{nonshared_model_forward.1} parent=0 // pred_region
    _
  $region9: #{nonshared_model_forward.1} parent=0 // pred_fallthru
    _
  // Predicated region
  $region10: #{nonshared_model_forward.1} parent=0 // pred_check
    _
  $region11: #{nonshared_model_forward.1} parent=0 // pred_check_branch
    %20 = sbr.rel (0) target = $region13
  $region12: #{nonshared_model_forward.1} parent=0 // pred_region
    _
  $region13: #{nonshared_model_forward.1} parent=0 // pred_fallthru
    _
  // Predicated region
  $region14: #{nonshared_model_forward.1} parent=0 // pred_check
    _
  $region15: #{nonshared_model_forward.1} parent=0 // pred_check_branch
    %22 = sbr.rel (0) target = $region17
  $region16: #{nonshared_model_forward.1} parent=0 // pred_region
    _
  $region17: #{nonshared_model_forward.1} parent=0 // pred_fallthru
    _
  // Predicated region
  $region18: #{nonshared_model_forward.1} parent=0 // pred_check
    _
  $region19: #{nonshared_model_forward.1} parent=0 // pred_check_branch
    %24 = sbr.rel (0) target = $region21
  $region20: #{nonshared_model_forward.1} parent=0 // pred_region
    _
  $region21: #{nonshared_model_forward.1} parent=0 // pred_fallthru
    _
  // Predicated region
  $region22: #{nonshared_model_forward.1} parent=0 // pred_check
    _
  $region23: #{nonshared_model_forward.1} parent=0 // pred_check_branch
    %26 = sbr.rel (0) target = $region25
  $region24: #{nonshared_model_forward.1} parent=0 // pred_region
    _
  $region25: #{nonshared_model_forward.1} parent=0 // pred_fallthru
    _
  // Predicated region
  $region26: #{nonshared_model_forward.1} parent=0 // pred_check
    _
  $region27: #{nonshared_model_forward.1} parent=0 // pred_check_branch
    %28 = sbr.rel (0) target = $region29
  $region28: #{nonshared_model_forward.1} parent=0 // pred_region
    _
  $region29: #{nonshared_model_forward.1} parent=0 // pred_fallthru
    _
  // Predicated region
  $region30: #{nonshared_model_forward.1} parent=0 // pred_check
    _
  $region31: #{nonshared_model_forward.1} parent=0 // pred_check_branch
    %30 = sbr.rel (0) target = $region33
  $region32: #{nonshared_model_forward.1} parent=0 // pred_region
    _
  $region33: #{nonshared_model_forward.1} parent=0 // pred_fallthru
    _
  // Predicated region
  $region34: #{nonshared_model_forward.1} parent=0 // pred_check
    _
  $region35: #{nonshared_model_forward.1} parent=0 // pred_check_branch
    %32 = sbr.rel (0) target = $region37
  $region36: #{nonshared_model_forward.1} parent=0 // pred_region
    _
  $region37: #{nonshared_model_forward.1} parent=0 // pred_fallthru
    _
  // Predicated region
  $region38: #{nonshared_model_forward.1} parent=0 // pred_check
    _
  $region39: #{nonshared_model_forward.1} parent=0 // pred_check_branch
    %34 = sbr.rel (0) target = $region41
  $region40: #{nonshared_model_forward.1} parent=0 // pred_region
    _
  $region41: #{nonshared_model_forward.1} parent=0 // pred_fallthru
    _
  %v35 = vld [vmem:[%s2] sm:$0xff]
  %v36 = vld [vmem:[%s3] sm:$0xff]
  %v37 = vld [vmem:[%s0] sm:$0xff]
  %v38 = vmul.f32 %v36, %v36
  %vm39 = vcmask 31744
  %v40 = vsel %vm39, %v38, 0.0
  %41 = vadd.xlane.f32.xlu0 %v40
  %v42 = vpop.xlane.xlu0 %41
  %v43 = vmul.f32 %v42, -1.0
  %v44 = vmul.f32 %v43, 0.2
  %v45 = vsub.f32 %v35, %v44
  %v46 = vmul.f32 %v36, %v37
  %v47 = vsel %vm39, %v46, 0.0
  %48 = vadd.xlane.f32.xlu0 %v47
  %v49 = vpop.xlane.xlu0 %48
  %v50 = vadd.f32 %v45, %v49
  %v51 = vld [vmem:[%s8] sm:$0xf]
  %v52 = vld [vmem:[%s9] sm:$0xf]
  %v53 = vld [vmem:[%s7] sm:$0x7]
  %s54 = scalar_lea.vmem %s1, 8
  %v55 = vld [vmem:[%s54] sm:$0xff]
  %v56 = vsel %vm39, %v55, 0.0
  %v57 = vrot.slane %v56, 4
  %v58 = vadd.f32 %v56, %v57
  %v59 = vrot.slane %v58, 2
  %v60 = vadd.f32 %v58, %v59
  %v61 = vrot.slane %v60, 1
  %v62 = vadd.f32 %v60, %v61
  %v63 = vrcp.pop 8.0
  %v64 = vmul.f32 %v62, %v63
  %v65 = vmul.f32 %v55, %v55
  %v66 = vsel %vm39, %v65, 0.0
  %v67 = vrot.slane %v66, 4
  %v68 = vadd.f32 %v66, %v67
  %v69 = vrot.slane %v68, 2
  %v70 = vadd.f32 %v68, %v69
  %v71 = vrot.slane %v70, 1
  %v72 = vadd.f32 %v70, %v71
  %v73 = vmul.f32 %v72, %v63
  %v74 = vmul.f32 %v64, %v64
  %v75 = vsub.f32 %v73, %v74
  %v76 = vsub.f32 %v55, %v64
  %v77 = vadd.f32 %v75, 1e-06
  %v78 = vrsqrt.pop %v77
  %v79 = vmul.f32 %v76, %v78
  %v80 = vlaneseq
  %v81 = vshrl.u32 %v80, 7
  %v82 = vsub.s32 0, %v81
  %v83 = vrot.slane %v51, %v82
  %v84 = vmul.f32 %v79, %v83
  %v85 = vlaneseq
  %v86 = vshrl.u32 %v85, 7
  %v87 = vsub.s32 0, %v86
  %v88 = vrot.slane %v52, %v87
  %v89 = vadd.f32 %v84, %v88
  %v90 = vld [vmem:[%s4] sm:$0xf]
  %v91 = vlaneseq
  %v92 = vshrl.u32 %v91, 7
  %v93 = vsub.s32 0, %v92
  %v94 = vrot.slane %v53, %v93
  %v96 = vsel %vm39, %v89, 0
  %vm98 = vcmask 1043456
  %v100 = vsel %vm98, %v90, 0
  %102 = vmatprep.subr.mxu0 0.0
  %103 = vmatpush1.msra.mxu0 %v100
  %104 = vmatprep.subr.mxu0 0.0
  %105 = vmatpush1.msra.mxu0 0.0
  %106 = vmatprep.subr.mxu0 0.0
  %107 = vmatpush1.msra.mxu0 0.0
  %108 = vmatprep.subr.mxu0 0.0
  %109 = vmatpush1.msra.mxu0 0.0
  %110 = vmatprep.subr.mxu0 0.0
  %111 = vmatpush1.msra.mxu0 0.0
  %112 = vmatprep.subr.mxu0 0.0
  %113 = vmatpush1.msra.mxu0 0.0
  %114 = vmatprep.subr.mxu0 0.0
  %115 = vmatpush1.msra.mxu0 0.0
  %116 = vmatprep.subr.mxu0 0.0
  %117 = vmatpush1.msra.mxu0 0.0
  %118 = vmatprep.subr.mxu0 0.0
  %119 = vmatpush1.msra.mxu0 0.0
  %120 = vmatprep.subr.mxu0 0.0
  %121 = vmatpush1.msra.mxu0 0.0
  %122 = vmatprep.subr.mxu0 0.0
  %123 = vmatpush1.msra.mxu0 0.0
  %124 = vmatprep.subr.mxu0 0.0
  %125 = vmatpush1.msra.mxu0 0.0
  %126 = vmatprep.subr.mxu0 0.0
  %127 = vmatpush1.msra.mxu0 0.0
  %128 = vmatprep.subr.mxu0 0.0
  %129 = vmatpush1.msra.mxu0 0.0
  %130 = vmatprep.subr.mxu0 0.0
  %131 = vmatpush1.msra.mxu0 0.0
  %132 = vmatprep.subr.mxu0 0.0
  %133 = vmatpush1.msra.mxu0 0.0
  %134 = vmatprep.subr.mxu0 0.0
  %135 = vmatpush1.msra.mxu0 0.0
  %136 = vmatprep.subr.mxu0 0.0
  %137 = vmatpush1.msra.mxu0 0.0
  %138 = vmatprep.subr.mxu0 0.0
  %139 = vmatpush1.msra.mxu0 0.0
  %140 = vmatprep.subr.mxu0 0.0
  %141 = vmatpush1.msra.mxu0 0.0
  %142 = vmatprep.subr.mxu0 0.0
  %143 = vmatpush1.msra.mxu0 0.0
  %144 = vmatprep.subr.mxu0 0.0
  %145 = vmatpush1.msra.mxu0 0.0
  %146 = vmatprep.subr.mxu0 0.0
  %147 = vmatpush1.msra.mxu0 0.0
  %148 = vmatprep.subr.mxu0 0.0
  %149 = vmatpush1.msra.mxu0 0.0
  %150 = vmatprep.subr.mxu0 0.0
  %151 = vmatpush1.msra.mxu0 0.0
  %152 = vmatprep.subr.mxu0 0.0
  %153 = vmatpush1.msra.mxu0 0.0
  %154 = vmatprep.subr.mxu0 0.0
  %155 = vmatpush1.msra.mxu0 0.0
  %156 = vmatprep.subr.mxu0 0.0
  %157 = vmatpush1.msra.mxu0 0.0
  %158 = vmatprep.subr.mxu0 0.0
  %159 = vmatpush1.msra.mxu0 0.0
  %160 = vmatprep.subr.mxu0 0.0
  %161 = vmatpush1.msra.mxu0 0.0
  %162 = vmatprep.subr.mxu0 0.0
  %163 = vmatpush1.msra.mxu0 0.0
  %164 = vmatprep.subr.mxu0 0.0
  %165 = vmatpush1.msra.mxu0 0.0
  %166 = vmatprep.mubr.f32.mxu0 0.0
  %167 = vmatmul.mubr.f32.gmra.mrb[0].mxu0 %v96
  %v168 = vpop.f32.mrb[0].mxu0
  %v169 = vadd.f32 %v94, %v168
  %v170 = vpop.f32.mrb[0].mxu0
  %171 = vdwg.mxu0
  %vm172 = vcmask 130048
  %v173 = vsel %vm172, %v169, 0.0
  %v174 = vrot.slane %v173, 4
  %v175 = vadd.f32 %v173, %v174
  %v176 = vrot.slane %v175, 2
  %v177 = vadd.f32 %v175, %v176
  %v178 = vrot.slane %v177, 1
  %v179 = vadd.f32 %v177, %v178
  %v180 = vmul.f32 %v179, %v63
  %v181 = vmul.f32 %v169, %v169
  %v182 = vsel %vm172, %v181, 0.0
  %v183 = vrot.slane %v182, 4
  %v184 = vadd.f32 %v182, %v183
  %v185 = vrot.slane %v184, 2
  %v186 = vadd.f32 %v184, %v185
  %v187 = vrot.slane %v186, 1
  %v188 = vadd.f32 %v186, %v187
  %v189 = vmul.f32 %v188, %v63
  %v190 = vmul.f32 %v180, %v180
  %v191 = vsub.f32 %v189, %v190
  %v192 = vsub.f32 %v169, %v180
  %v193 = vadd.f32 %v191, 1e-06
  %v194 = vrsqrt.pop %v193
  %v195 = vmul.f32 %v192, %v194
  %v196 = vlaneseq
  %v197 = vshrl.u32 %v196, 7
  %v198 = vsub.s32 1, %v197
  %v199 = vrot.slane %v51, %v198
  %v200 = vmul.f32 %v195, %v199
  %v201 = vlaneseq
  %v202 = vshrl.u32 %v201, 7
  %v203 = vsub.s32 1, %v202
  %v204 = vrot.slane %v52, %v203
  %v205 = vadd.f32 %v200, %v204
  %v206 = vmax.f32 %v205, 0.0
  %v207 = vld [vmem:[%s5] sm:$0xff]
  %v208 = vld [vmem:[%s5 + $0x8] sm:$0xff]
  %v209 = vlaneseq
  %v210 = vshrl.u32 %v209, 7
  %v211 = vsub.s32 1, %v210
  %v212 = vrot.slane %v53, %v211
  %v214 = vsel %vm172, %v206, 0
  %216 = vmatprep.subr.mxu0 0.0
  %217 = vmatpush1.msra.mxu0 %v207
  %218 = vmatprep.subr.mxu0 0.0
  %219 = vmatpush1.msra.mxu0 %v208
  %220 = vmatprep.subr.mxu0 0.0
  %221 = vmatpush1.msra.mxu0 0.0
  %222 = vmatprep.subr.mxu0 0.0
  %223 = vmatpush1.msra.mxu0 0.0
  %224 = vmatprep.subr.mxu0 0.0
  %225 = vmatpush1.msra.mxu0 0.0
  %226 = vmatprep.subr.mxu0 0.0
  %227 = vmatpush1.msra.mxu0 0.0
  %228 = vmatprep.subr.mxu0 0.0
  %229 = vmatpush1.msra.mxu0 0.0
  %230 = vmatprep.subr.mxu0 0.0
  %231 = vmatpush1.msra.mxu0 0.0
  %232 = vmatprep.subr.mxu0 0.0
  %233 = vmatpush1.msra.mxu0 0.0
  %234 = vmatprep.subr.mxu0 0.0
  %235 = vmatpush1.msra.mxu0 0.0
  %236 = vmatprep.subr.mxu0 0.0
  %237 = vmatpush1.msra.mxu0 0.0
  %238 = vmatprep.subr.mxu0 0.0
  %239 = vmatpush1.msra.mxu0 0.0
  %240 = vmatprep.subr.mxu0 0.0
  %241 = vmatpush1.msra.mxu0 0.0
  %242 = vmatprep.subr.mxu0 0.0
  %243 = vmatpush1.msra.mxu0 0.0
  %244 = vmatprep.subr.mxu0 0.0
  %245 = vmatpush1.msra.mxu0 0.0
  %246 = vmatprep.subr.mxu0 0.0
  %247 = vmatpush1.msra.mxu0 0.0
  %248 = vmatprep.subr.mxu0 0.0
  %249 = vmatpush1.msra.mxu0 0.0
  %250 = vmatprep.subr.mxu0 0.0
  %251 = vmatpush1.msra.mxu0 0.0
  %252 = vmatprep.subr.mxu0 0.0
  %253 = vmatpush1.msra.mxu0 0.0
  %254 = vmatprep.subr.mxu0 0.0
  %255 = vmatpush1.msra.mxu0 0.0
  %256 = vmatprep.subr.mxu0 0.0
  %257 = vmatpush1.msra.mxu0 0.0
  %258 = vmatprep.subr.mxu0 0.0
  %259 = vmatpush1.msra.mxu0 0.0
  %260 = vmatprep.subr.mxu0 0.0
  %261 = vmatpush1.msra.mxu0 0.0
  %262 = vmatprep.subr.mxu0 0.0
  %263 = vmatpush1.msra.mxu0 0.0
  %264 = vmatprep.subr.mxu0 0.0
  %265 = vmatpush1.msra.mxu0 0.0
  %266 = vmatprep.subr.mxu0 0.0
  %267 = vmatpush1.msra.mxu0 0.0
  %268 = vmatprep.subr.mxu0 0.0
  %269 = vmatpush1.msra.mxu0 0.0
  %270 = vmatprep.subr.mxu0 0.0
  %271 = vmatpush1.msra.mxu0 0.0
  %272 = vmatprep.subr.mxu0 0.0
  %273 = vmatpush1.msra.mxu0 0.0
  %274 = vmatprep.subr.mxu0 0.0
  %275 = vmatpush1.msra.mxu0 0.0
  %276 = vmatprep.subr.mxu0 0.0
  %277 = vmatpush1.msra.mxu0 0.0
  %278 = vmatprep.subr.mxu0 0.0
  %279 = vmatpush1.msra.mxu0 0.0
  %280 = vmatprep.mubr.f32.mxu0 0.0
  %281 = vmatmul.mubr.f32.gmra.mrb[0].mxu0 %v214
  %v282 = vpop.f32.mrb[0].mxu0
  %v283 = vadd.f32 %v212, %v282
  %v284 = vpop.f32.mrb[0].mxu0
  %285 = vdwg.mxu0
  %v286 = vsel %vm172, %v283, 0.0
  %v287 = vrot.slane %v286, 4
  %v288 = vadd.f32 %v286, %v287
  %v289 = vrot.slane %v288, 2
  %v290 = vadd.f32 %v288, %v289
  %v291 = vrot.slane %v290, 1
  %v292 = vadd.f32 %v290, %v291
  %v293 = vmul.f32 %v292, %v63
  %v294 = vmul.f32 %v283, %v283
  %v295 = vsel %vm172, %v294, 0.0
  %v296 = vrot.slane %v295, 4
  %v297 = vadd.f32 %v295, %v296
  %v298 = vrot.slane %v297, 2
  %v299 = vadd.f32 %v297, %v298
  %v300 = vrot.slane %v299, 1
  %v301 = vadd.f32 %v299, %v300
  %v302 = vmul.f32 %v301, %v63
  %v303 = vmul.f32 %v293, %v293
  %v304 = vsub.f32 %v302, %v303
  %v305 = vsub.f32 %v283, %v293
  %v306 = vadd.f32 %v304, 1e-06
  %v307 = vrsqrt.pop %v306
  %v308 = vmul.f32 %v305, %v307
  %v309 = vlaneseq
  %v310 = vshrl.u32 %v309, 7
  %v311 = vsub.s32 2, %v310
  %v312 = vrot.slane %v51, %v311
  %v313 = vmul.f32 %v308, %v312
  %v314 = vlaneseq
  %v315 = vshrl.u32 %v314, 7
  %v316 = vsub.s32 2, %v315
  %v317 = vrot.slane %v52, %v316
  %v318 = vadd.f32 %v313, %v317
  %v319 = vmax.f32 %v318, 0.0
  %v320 = vld [vmem:[%s6] sm:$0xff]
  %v321 = vld [vmem:[%s6 + $0x8] sm:$0xff]
  %v322 = vlaneseq
  %v323 = vshrl.u32 %v322, 7
  %v324 = vsub.s32 2, %v323
  %v325 = vrot.slane %v53, %v324
  %v327 = vsel %vm172, %v319, 0
  %329 = vmatprep.subr.mxu0 0.0
  %330 = vmatpush1.msra.mxu0 %v320
  %331 = vmatprep.subr.mxu0 0.0
  %332 = vmatpush1.msra.mxu0 %v321
  %333 = vmatprep.subr.mxu0 0.0
  %334 = vmatpush1.msra.mxu0 0.0
  %335 = vmatprep.subr.mxu0 0.0
  %336 = vmatpush1.msra.mxu0 0.0
  %337 = vmatprep.subr.mxu0 0.0
  %338 = vmatpush1.msra.mxu0 0.0
  %339 = vmatprep.subr.mxu0 0.0
  %340 = vmatpush1.msra.mxu0 0.0
  %341 = vmatprep.subr.mxu0 0.0
  %342 = vmatpush1.msra.mxu0 0.0
  %343 = vmatprep.subr.mxu0 0.0
  %344 = vmatpush1.msra.mxu0 0.0
  %345 = vmatprep.subr.mxu0 0.0
  %346 = vmatpush1.msra.mxu0 0.0
  %347 = vmatprep.subr.mxu0 0.0
  %348 = vmatpush1.msra.mxu0 0.0
  %349 = vmatprep.subr.mxu0 0.0
  %350 = vmatpush1.msra.mxu0 0.0
  %351 = vmatprep.subr.mxu0 0.0
  %352 = vmatpush1.msra.mxu0 0.0
  %353 = vmatprep.subr.mxu0 0.0
  %354 = vmatpush1.msra.mxu0 0.0
  %355 = vmatprep.subr.mxu0 0.0
  %356 = vmatpush1.msra.mxu0 0.0
  %357 = vmatprep.subr.mxu0 0.0
  %358 = vmatpush1.msra.mxu0 0.0
  %359 = vmatprep.subr.mxu0 0.0
  %360 = vmatpush1.msra.mxu0 0.0
  %361 = vmatprep.subr.mxu0 0.0
  %362 = vmatpush1.msra.mxu0 0.0
  %363 = vmatprep.subr.mxu0 0.0
  %364 = vmatpush1.msra.mxu0 0.0
  %365 = vmatprep.subr.mxu0 0.0
  %366 = vmatpush1.msra.mxu0 0.0
  %367 = vmatprep.subr.mxu0 0.0
  %368 = vmatpush1.msra.mxu0 0.0
  %369 = vmatprep.subr.mxu0 0.0
  %370 = vmatpush1.msra.mxu0 0.0
  %371 = vmatprep.subr.mxu0 0.0
  %372 = vmatpush1.msra.mxu0 0.0
  %373 = vmatprep.subr.mxu0 0.0
  %374 = vmatpush1.msra.mxu0 0.0
  %375 = vmatprep.subr.mxu0 0.0
  %376 = vmatpush1.msra.mxu0 0.0
  %377 = vmatprep.subr.mxu0 0.0
  %378 = vmatpush1.msra.mxu0 0.0
  %379 = vmatprep.subr.mxu0 0.0
  %380 = vmatpush1.msra.mxu0 0.0
  %381 = vmatprep.subr.mxu0 0.0
  %382 = vmatpush1.msra.mxu0 0.0
  %383 = vmatprep.subr.mxu0 0.0
  %384 = vmatpush1.msra.mxu0 0.0
  %385 = vmatprep.subr.mxu0 0.0
  %386 = vmatpush1.msra.mxu0 0.0
  %387 = vmatprep.subr.mxu0 0.0
  %388 = vmatpush1.msra.mxu0 0.0
  %389 = vmatprep.subr.mxu0 0.0
  %390 = vmatpush1.msra.mxu0 0.0
  %391 = vmatprep.subr.mxu0 0.0
  %392 = vmatpush1.msra.mxu0 0.0
  %393 = vmatprep.mubr.f32.mxu0 0.0
  %394 = vmatmul.mubr.f32.gmra.mrb[0].mxu0 %v327
  %v395 = vpop.f32.mrb[0].mxu0
  %v396 = vadd.f32 %v325, %v395
  %v397 = vpop.f32.mrb[0].mxu0
  %398 = vdwg.mxu0
  %v399 = vsel %vm39, %v396, 0.0
  %v400 = vrot.slane %v399, 4
  %v401 = vadd.f32 %v399, %v400
  %v402 = vrot.slane %v401, 2
  %v403 = vadd.f32 %v401, %v402
  %v404 = vrot.slane %v403, 1
  %v405 = vadd.f32 %v403, %v404
  %v406 = vmul.f32 %v405, %v63
  %v407 = vmul.f32 %v396, %v396
  %v408 = vsel %vm39, %v407, 0.0
  %v409 = vrot.slane %v408, 4
  %v410 = vadd.f32 %v408, %v409
  %v411 = vrot.slane %v410, 2
  %v412 = vadd.f32 %v410, %v411
  %v413 = vrot.slane %v412, 1
  %v414 = vadd.f32 %v412, %v413
  %v415 = vmul.f32 %v414, %v63
  %v416 = vmul.f32 %v406, %v406
  %v417 = vsub.f32 %v415, %v416
  %v418 = vsub.f32 %v396, %v406
  %v419 = vadd.f32 %v417, 1e-06
  %v420 = vrsqrt.pop %v419
  %v421 = vmul.f32 %v418, %v420
  %v422 = vlaneseq
  %v423 = vshrl.u32 %v422, 7
  %v424 = vsub.s32 3, %v423
  %v425 = vrot.slane %v51, %v424
  %v426 = vmul.f32 %v421, %v425
  %v427 = vlaneseq
  %v428 = vshrl.u32 %v427, 7
  %v429 = vsub.s32 3, %v428
  %v430 = vrot.slane %v52, %v429
  %v431 = vadd.f32 %v426, %v430
  %v432 = vrcp.pop 4.0
  %v433 = vmul.f32 %v431, %v432
  %s434 = scalar_lea.vmem %s0, 8
  %v435 = vld [vmem:[%s434] sm:$0xff]
  %v436 = vmul.f32 %v433, %v433
  %v437 = vsel %vm39, %v436, 0.0
  %438 = vadd.xlane.f32.xlu0 %v437
  %v439 = vpop.xlane.xlu0 %438
  %v440 = vmul.f32 %v439, -1.0
  %v441 = vmul.f32 %v440, 0.2
  %v442 = vsub.f32 %v50, %v441
  %v443 = vmul.f32 %v433, %v435
  %v444 = vsel %vm39, %v443, 0.0
  %445 = vadd.xlane.f32.xlu0 %v444
  %v446 = vpop.xlane.xlu0 %445
  %v447 = vadd.f32 %v442, %v446
  %s448 = scalar_lea.vmem %s8, 4
  %v449 = vld [vmem:[%s448] sm:$0xf]
  %s450 = scalar_lea.vmem %s9, 4
  %v451 = vld [vmem:[%s450] sm:$0xf]
  %s452 = scalar_lea.vmem %s7, 4
  %v453 = vld [vmem:[%s452] sm:$0x7]
  %s454 = scalar_lea.vmem %s1, 16
  %v455 = vld [vmem:[%s454] sm:$0xff]
  %v456 = vsel %vm39, %v455, 0.0
  %v457 = vrot.slane %v456, 4
  %v458 = vadd.f32 %v456, %v457
  %v459 = vrot.slane %v458, 2
  %v460 = vadd.f32 %v458, %v459
  %v461 = vrot.slane %v460, 1
  %v462 = vadd.f32 %v460, %v461
  %v463 = vmul.f32 %v462, %v63
  %v464 = vmul.f32 %v455, %v455
  %v465 = vsel %vm39, %v464, 0.0
  %v466 = vrot.slane %v465, 4
  %v467 = vadd.f32 %v465, %v466
  %v468 = vrot.slane %v467, 2
  %v469 = vadd.f32 %v467, %v468
  %v470 = vrot.slane %v469, 1
  %v471 = vadd.f32 %v469, %v470
  %v472 = vmul.f32 %v471, %v63
  %v473 = vmul.f32 %v463, %v463
  %v474 = vsub.f32 %v472, %v473
  %v475 = vsub.f32 %v455, %v463
  %v476 = vadd.f32 %v474, 1e-06
  %v477 = vrsqrt.pop %v476
  %v478 = vmul.f32 %v475, %v477
  %v479 = vlaneseq
  %v480 = vshrl.u32 %v479, 7
  %v481 = vsub.s32 0, %v480
  %v482 = vrot.slane %v449, %v481
  %v483 = vmul.f32 %v478, %v482
  %v484 = vlaneseq
  %v485 = vshrl.u32 %v484, 7
  %v486 = vsub.s32 0, %v485
  %v487 = vrot.slane %v451, %v486
  %v488 = vadd.f32 %v483, %v487
  %s489 = scalar_lea.vmem %s4, 4
  %v490 = vld [vmem:[%s489] sm:$0xf]
  %v491 = vlaneseq
  %v492 = vshrl.u32 %v491, 7
  %v493 = vsub.s32 0, %v492
  %v494 = vrot.slane %v453, %v493
  %v496 = vsel %vm39, %v488, 0
  %v499 = vsel %vm98, %v490, 0
  %501 = vmatprep.subr.mxu0 0.0
  %502 = vmatpush1.msra.mxu0 %v499
  %503 = vmatprep.subr.mxu0 0.0
  %504 = vmatpush1.msra.mxu0 0.0
  %505 = vmatprep.subr.mxu0 0.0
  %506 = vmatpush1.msra.mxu0 0.0
  %507 = vmatprep.subr.mxu0 0.0
  %508 = vmatpush1.msra.mxu0 0.0
  %509 = vmatprep.subr.mxu0 0.0
  %510 = vmatpush1.msra.mxu0 0.0
  %511 = vmatprep.subr.mxu0 0.0
  %512 = vmatpush1.msra.mxu0 0.0
  %513 = vmatprep.subr.mxu0 0.0
  %514 = vmatpush1.msra.mxu0 0.0
  %515 = vmatprep.subr.mxu0 0.0
  %516 = vmatpush1.msra.mxu0 0.0
  %517 = vmatprep.subr.mxu0 0.0
  %518 = vmatpush1.msra.mxu0 0.0
  %519 = vmatprep.subr.mxu0 0.0
  %520 = vmatpush1.msra.mxu0 0.0
  %521 = vmatprep.subr.mxu0 0.0
  %522 = vmatpush1.msra.mxu0 0.0
  %523 = vmatprep.subr.mxu0 0.0
  %524 = vmatpush1.msra.mxu0 0.0
  %525 = vmatprep.subr.mxu0 0.0
  %526 = vmatpush1.msra.mxu0 0.0
  %527 = vmatprep.subr.mxu0 0.0
  %528 = vmatpush1.msra.mxu0 0.0
  %529 = vmatprep.subr.mxu0 0.0
  %530 = vmatpush1.msra.mxu0 0.0
  %531 = vmatprep.subr.mxu0 0.0
  %532 = vmatpush1.msra.mxu0 0.0
  %533 = vmatprep.subr.mxu0 0.0
  %534 = vmatpush1.msra.mxu0 0.0
  %535 = vmatprep.subr.mxu0 0.0
  %536 = vmatpush1.msra.mxu0 0.0
  %537 = vmatprep.subr.mxu0 0.0
  %538 = vmatpush1.msra.mxu0 0.0
  %539 = vmatprep.subr.mxu0 0.0
  %540 = vmatpush1.msra.mxu0 0.0
  %541 = vmatprep.subr.mxu0 0.0
  %542 = vmatpush1.msra.mxu0 0.0
  %543 = vmatprep.subr.mxu0 0.0
  %544 = vmatpush1.msra.mxu0 0.0
  %545 = vmatprep.subr.mxu0 0.0
  %546 = vmatpush1.msra.mxu0 0.0
  %547 = vmatprep.subr.mxu0 0.0
  %548 = vmatpush1.msra.mxu0 0.0
  %549 = vmatprep.subr.mxu0 0.0
  %550 = vmatpush1.msra.mxu0 0.0
  %551 = vmatprep.subr.mxu0 0.0
  %552 = vmatpush1.msra.mxu0 0.0
  %553 = vmatprep.subr.mxu0 0.0
  %554 = vmatpush1.msra.mxu0 0.0
  %555 = vmatprep.subr.mxu0 0.0
  %556 = vmatpush1.msra.mxu0 0.0
  %557 = vmatprep.subr.mxu0 0.0
  %558 = vmatpush1.msra.mxu0 0.0
  %559 = vmatprep.subr.mxu0 0.0
  %560 = vmatpush1.msra.mxu0 0.0
  %561 = vmatprep.subr.mxu0 0.0
  %562 = vmatpush1.msra.mxu0 0.0
  %563 = vmatprep.subr.mxu0 0.0
  %564 = vmatpush1.msra.mxu0 0.0
  %565 = vmatprep.mubr.f32.mxu0 0.0
  %566 = vmatmul.mubr.f32.gmra.mrb[0].mxu0 %v496
  %v567 = vpop.f32.mrb[0].mxu0
  %v568 = vadd.f32 %v494, %v567
  %v569 = vpop.f32.mrb[0].mxu0
  %570 = vdwg.mxu0
  %v571 = vsel %vm172, %v568, 0.0
  %v572 = vrot.slane %v571, 4
  %v573 = vadd.f32 %v571, %v572
  %v574 = vrot.slane %v573, 2
  %v575 = vadd.f32 %v573, %v574
  %v576 = vrot.slane %v575, 1
  %v577 = vadd.f32 %v575, %v576
  %v578 = vmul.f32 %v577, %v63
  %v579 = vmul.f32 %v568, %v568
  %v580 = vsel %vm172, %v579, 0.0
  %v581 = vrot.slane %v580, 4
  %v582 = vadd.f32 %v580, %v581
  %v583 = vrot.slane %v582, 2
  %v584 = vadd.f32 %v582, %v583
  %v585 = vrot.slane %v584, 1
  %v586 = vadd.f32 %v584, %v585
  %v587 = vmul.f32 %v586, %v63
  %v588 = vmul.f32 %v578, %v578
  %v589 = vsub.f32 %v587, %v588
  %v590 = vsub.f32 %v568, %v578
  %v591 = vadd.f32 %v589, 1e-06
  %v592 = vrsqrt.pop %v591
  %v593 = vmul.f32 %v590, %v592
  %v594 = vlaneseq
  %v595 = vshrl.u32 %v594, 7
  %v596 = vsub.s32 1, %v595
  %v597 = vrot.slane %v449, %v596
  %v598 = vmul.f32 %v593, %v597
  %v599 = vlaneseq
  %v600 = vshrl.u32 %v599, 7
  %v601 = vsub.s32 1, %v600
  %v602 = vrot.slane %v451, %v601
  %v603 = vadd.f32 %v598, %v602
  %v604 = vmax.f32 %v603, 0.0
  %s605 = scalar_lea.vmem %s5, 16
  %v606 = vld [vmem:[%s605] sm:$0xff]
  %v607 = vld [vmem:[%s605 + $0x8] sm:$0xff]
  %v608 = vlaneseq
  %v609 = vshrl.u32 %v608, 7
  %v610 = vsub.s32 1, %v609
  %v611 = vrot.slane %v453, %v610
  %v613 = vsel %vm172, %v604, 0
  %615 = vmatprep.subr.mxu0 0.0
  %616 = vmatpush1.msra.mxu0 %v606
  %617 = vmatprep.subr.mxu0 0.0
  %618 = vmatpush1.msra.mxu0 %v607
  %619 = vmatprep.subr.mxu0 0.0
  %620 = vmatpush1.msra.mxu0 0.0
  %621 = vmatprep.subr.mxu0 0.0
  %622 = vmatpush1.msra.mxu0 0.0
  %623 = vmatprep.subr.mxu0 0.0
  %624 = vmatpush1.msra.mxu0 0.0
  %625 = vmatprep.subr.mxu0 0.0
  %626 = vmatpush1.msra.mxu0 0.0
  %627 = vmatprep.subr.mxu0 0.0
  %628 = vmatpush1.msra.mxu0 0.0
  %629 = vmatprep.subr.mxu0 0.0
  %630 = vmatpush1.msra.mxu0 0.0
  %631 = vmatprep.subr.mxu0 0.0
  %632 = vmatpush1.msra.mxu0 0.0
  %633 = vmatprep.subr.mxu0 0.0
  %634 = vmatpush1.msra.mxu0 0.0
  %635 = vmatprep.subr.mxu0 0.0
  %636 = vmatpush1.msra.mxu0 0.0
  %637 = vmatprep.subr.mxu0 0.0
  %638 = vmatpush1.msra.mxu0 0.0
  %639 = vmatprep.subr.mxu0 0.0
  %640 = vmatpush1.msra.mxu0 0.0
  %641 = vmatprep.subr.mxu0 0.0
  %642 = vmatpush1.msra.mxu0 0.0
  %643 = vmatprep.subr.mxu0 0.0
  %644 = vmatpush1.msra.mxu0 0.0
  %645 = vmatprep.subr.mxu0 0.0
  %646 = vmatpush1.msra.mxu0 0.0
  %647 = vmatprep.subr.mxu0 0.0
  %648 = vmatpush1.msra.mxu0 0.0
  %649 = vmatprep.subr.mxu0 0.0
  %650 = vmatpush1.msra.mxu0 0.0
  %651 = vmatprep.subr.mxu0 0.0
  %652 = vmatpush1.msra.mxu0 0.0
  %653 = vmatprep.subr.mxu0 0.0
  %654 = vmatpush1.msra.mxu0 0.0
  %655 = vmatprep.subr.mxu0 0.0
  %656 = vmatpush1.msra.mxu0 0.0
  %657 = vmatprep.subr.mxu0 0.0
  %658 = vmatpush1.msra.mxu0 0.0
  %659 = vmatprep.subr.mxu0 0.0
  %660 = vmatpush1.msra.mxu0 0.0
  %661 = vmatprep.subr.mxu0 0.0
  %662 = vmatpush1.msra.mxu0 0.0
  %663 = vmatprep.subr.mxu0 0.0
  %664 = vmatpush1.msra.mxu0 0.0
  %665 = vmatprep.subr.mxu0 0.0
  %666 = vmatpush1.msra.mxu0 0.0
  %667 = vmatprep.subr.mxu0 0.0
  %668 = vmatpush1.msra.mxu0 0.0
  %669 = vmatprep.subr.mxu0 0.0
  %670 = vmatpush1.msra.mxu0 0.0
  %671 = vmatprep.subr.mxu0 0.0
  %672 = vmatpush1.msra.mxu0 0.0
  %673 = vmatprep.subr.mxu0 0.0
  %674 = vmatpush1.msra.mxu0 0.0
  %675 = vmatprep.subr.mxu0 0.0
  %676 = vmatpush1.msra.mxu0 0.0
  %677 = vmatprep.subr.mxu0 0.0
  %678 = vmatpush1.msra.mxu0 0.0
  %679 = vmatprep.mubr.f32.mxu0 0.0
  %680 = vmatmul.mubr.f32.gmra.mrb[0].mxu0 %v613
  %v681 = vpop.f32.mrb[0].mxu0
  %v682 = vadd.f32 %v611, %v681
  %v683 = vpop.f32.mrb[0].mxu0
  %684 = vdwg.mxu0
  %v685 = vsel %vm172, %v682, 0.0
  %v686 = vrot.slane %v685, 4
  %v687 = vadd.f32 %v685, %v686
  %v688 = vrot.slane %v687, 2
  %v689 = vadd.f32 %v687, %v688
  %v690 = vrot.slane %v689, 1
  %v691 = vadd.f32 %v689, %v690
  %v692 = vmul.f32 %v691, %v63
  %v693 = vmul.f32 %v682, %v682
  %v694 = vsel %vm172, %v693, 0.0
  %v695 = vrot.slane %v694, 4
  %v696 = vadd.f32 %v694, %v695
  %v697 = vrot.slane %v696, 2
  %v698 = vadd.f32 %v696, %v697
  %v699 = vrot.slane %v698, 1
  %v700 = vadd.f32 %v698, %v699
  %v701 = vmul.f32 %v700, %v63
  %v702 = vmul.f32 %v692, %v692
  %v703 = vsub.f32 %v701, %v702
  %v704 = vsub.f32 %v682, %v692
  %v705 = vadd.f32 %v703, 1e-06
  %v706 = vrsqrt.pop %v705
  %v707 = vmul.f32 %v704, %v706
  %v708 = vlaneseq
  %v709 = vshrl.u32 %v708, 7
  %v710 = vsub.s32 2, %v709
  %v711 = vrot.slane %v449, %v710
  %v712 = vmul.f32 %v707, %v711
  %v713 = vlaneseq
  %v714 = vshrl.u32 %v713, 7
  %v715 = vsub.s32 2, %v714
  %v716 = vrot.slane %v451, %v715
  %v717 = vadd.f32 %v712, %v716
  %v718 = vmax.f32 %v717, 0.0
  %s719 = scalar_lea.vmem %s6, 16
  %v720 = vld [vmem:[%s719] sm:$0xff]
  %v721 = vld [vmem:[%s719 + $0x8] sm:$0xff]
  %v722 = vlaneseq
  %v723 = vshrl.u32 %v722, 7
  %v724 = vsub.s32 2, %v723
  %v725 = vrot.slane %v453, %v724
  %v727 = vsel %vm172, %v718, 0
  %729 = vmatprep.subr.mxu0 0.0
  %730 = vmatpush1.msra.mxu0 %v720
  %731 = vmatprep.subr.mxu0 0.0
  %732 = vmatpush1.msra.mxu0 %v721
  %733 = vmatprep.subr.mxu0 0.0
  %734 = vmatpush1.msra.mxu0 0.0
  %735 = vmatprep.subr.mxu0 0.0
  %736 = vmatpush1.msra.mxu0 0.0
  %737 = vmatprep.subr.mxu0 0.0
  %738 = vmatpush1.msra.mxu0 0.0
  %739 = vmatprep.subr.mxu0 0.0
  %740 = vmatpush1.msra.mxu0 0.0
  %741 = vmatprep.subr.mxu0 0.0
  %742 = vmatpush1.msra.mxu0 0.0
  %743 = vmatprep.subr.mxu0 0.0
  %744 = vmatpush1.msra.mxu0 0.0
  %745 = vmatprep.subr.mxu0 0.0
  %746 = vmatpush1.msra.mxu0 0.0
  %747 = vmatprep.subr.mxu0 0.0
  %748 = vmatpush1.msra.mxu0 0.0
  %749 = vmatprep.subr.mxu0 0.0
  %750 = vmatpush1.msra.mxu0 0.0
  %751 = vmatprep.subr.mxu0 0.0
  %752 = vmatpush1.msra.mxu0 0.0
  %753 = vmatprep.subr.mxu0 0.0
  %754 = vmatpush1.msra.mxu0 0.0
  %755 = vmatprep.subr.mxu0 0.0
  %756 = vmatpush1.msra.mxu0 0.0
  %757 = vmatprep.subr.mxu0 0.0
  %758 = vmatpush1.msra.mxu0 0.0
  %759 = vmatprep.subr.mxu0 0.0
  %760 = vmatpush1.msra.mxu0 0.0
  %761 = vmatprep.subr.mxu0 0.0
  %762 = vmatpush1.msra.mxu0 0.0
  %763 = vmatprep.subr.mxu0 0.0
  %764 = vmatpush1.msra.mxu0 0.0
  %765 = vmatprep.subr.mxu0 0.0
  %766 = vmatpush1.msra.mxu0 0.0
  %767 = vmatprep.subr.mxu0 0.0
  %768 = vmatpush1.msra.mxu0 0.0
  %769 = vmatprep.subr.mxu0 0.0
  %770 = vmatpush1.msra.mxu0 0.0
  %771 = vmatprep.subr.mxu0 0.0
  %772 = vmatpush1.msra.mxu0 0.0
  %773 = vmatprep.subr.mxu0 0.0
  %774 = vmatpush1.msra.mxu0 0.0
  %775 = vmatprep.subr.mxu0 0.0
  %776 = vmatpush1.msra.mxu0 0.0
  %777 = vmatprep.subr.mxu0 0.0
  %778 = vmatpush1.msra.mxu0 0.0
  %779 = vmatprep.subr.mxu0 0.0
  %780 = vmatpush1.msra.mxu0 0.0
  %781 = vmatprep.subr.mxu0 0.0
  %782 = vmatpush1.msra.mxu0 0.0
  %783 = vmatprep.subr.mxu0 0.0
  %784 = vmatpush1.msra.mxu0 0.0
  %785 = vmatprep.subr.mxu0 0.0
  %786 = vmatpush1.msra.mxu0 0.0
  %787 = vmatprep.subr.mxu0 0.0
  %788 = vmatpush1.msra.mxu0 0.0
  %789 = vmatprep.subr.mxu0 0.0
  %790 = vmatpush1.msra.mxu0 0.0
  %791 = vmatprep.subr.mxu0 0.0
  %792 = vmatpush1.msra.mxu0 0.0
  %793 = vmatprep.mubr.f32.mxu0 0.0
  %794 = vmatmul.mubr.f32.gmra.mrb[0].mxu0 %v727
  %v795 = vpop.f32.mrb[0].mxu0
  %v796 = vadd.f32 %v725, %v795
  %v797 = vpop.f32.mrb[0].mxu0
  %798 = vdwg.mxu0
  %v799 = vsel %vm39, %v796, 0.0
  %v800 = vrot.slane %v799, 4
  %v801 = vadd.f32 %v799, %v800
  %v802 = vrot.slane %v801, 2
  %v803 = vadd.f32 %v801, %v802
  %v804 = vrot.slane %v803, 1
  %v805 = vadd.f32 %v803, %v804
  %v806 = vmul.f32 %v805, %v63
  %v807 = vmul.f32 %v796, %v796
  %v808 = vsel %vm39, %v807, 0.0
  %v809 = vrot.slane %v808, 4
  %v810 = vadd.f32 %v808, %v809
  %v811 = vrot.slane %v810, 2
  %v812 = vadd.f32 %v810, %v811
  %v813 = vrot.slane %v812, 1
  %v814 = vadd.f32 %v812, %v813
  %v815 = vmul.f32 %v814, %v63
  %v816 = vmul.f32 %v806, %v806
  %v817 = vsub.f32 %v815, %v816
  %v818 = vsub.f32 %v796, %v806
  %v819 = vadd.f32 %v817, 1e-06
  %v820 = vrsqrt.pop %v819
  %v821 = vmul.f32 %v818, %v820
  %v822 = vlaneseq
  %v823 = vshrl.u32 %v822, 7
  %v824 = vsub.s32 3, %v823
  %v825 = vrot.slane %v449, %v824
  %v826 = vmul.f32 %v821, %v825
  %v827 = vlaneseq
  %v828 = vshrl.u32 %v827, 7
  %v829 = vsub.s32 3, %v828
  %v830 = vrot.slane %v451, %v829
  %v831 = vadd.f32 %v826, %v830
  %v832 = vmul.f32 %v831, %v432
  %s833 = scalar_lea.vmem %s0, 16
  %v834 = vld [vmem:[%s833] sm:$0xff]
  %v835 = vmul.f32 %v832, %v832
  %v836 = vsel %vm39, %v835, 0.0
  %837 = vadd.xlane.f32.xlu0 %v836
  %v838 = vpop.xlane.xlu0 %837
  %v839 = vmul.f32 %v838, -1.0
  %v840 = vmul.f32 %v839, 0.2
  %v841 = vsub.f32 %v447, %v840
  %v842 = vmul.f32 %v832, %v834
  %v843 = vsel %vm39, %v842, 0.0
  %844 = vadd.xlane.f32.xlu0 %v843
  %v845 = vpop.xlane.xlu0 %844
  %v846 = vadd.f32 %v841, %v845
  %s847 = scalar_lea.vmem %s8, 8
  %v848 = vld [vmem:[%s847] sm:$0xf]
  %s849 = scalar_lea.vmem %s9, 8
  %v850 = vld [vmem:[%s849] sm:$0xf]
  %s851 = scalar_lea.vmem %s7, 8
  %v852 = vld [vmem:[%s851] sm:$0x7]
  %s853 = scalar_lea.vmem %s1, 24
  %v854 = vld [vmem:[%s853] sm:$0xff]
  %v855 = vsel %vm39, %v854, 0.0
  %v856 = vrot.slane %v855, 4
  %v857 = vadd.f32 %v855, %v856
  %v858 = vrot.slane %v857, 2
  %v859 = vadd.f32 %v857, %v858
  %v860 = vrot.slane %v859, 1
  %v861 = vadd.f32 %v859, %v860
  %v862 = vmul.f32 %v861, %v63
  %v863 = vmul.f32 %v854, %v854
  %v864 = vsel %vm39, %v863, 0.0
  %v865 = vrot.slane %v864, 4
  %v866 = vadd.f32 %v864, %v865
  %v867 = vrot.slane %v866, 2
  %v868 = vadd.f32 %v866, %v867
  %v869 = vrot.slane %v868, 1
  %v870 = vadd.f32 %v868, %v869
  %v871 = vmul.f32 %v870, %v63
  %v872 = vmul.f32 %v862, %v862
  %v873 = vsub.f32 %v871, %v872
  %v874 = vsub.f32 %v854, %v862
  %v875 = vadd.f32 %v873, 1e-06
  %v876 = vrsqrt.pop %v875
  %v877 = vmul.f32 %v874, %v876
  %v878 = vlaneseq
  %v879 = vshrl.u32 %v878, 7
  %v880 = vsub.s32 0, %v879
  %v881 = vrot.slane %v848, %v880
  %v882 = vmul.f32 %v877, %v881
  %v883 = vlaneseq
  %v884 = vshrl.u32 %v883, 7
  %v885 = vsub.s32 0, %v884
  %v886 = vrot.slane %v850, %v885
  %v887 = vadd.f32 %v882, %v886
  %s888 = scalar_lea.vmem %s4, 8
  %v889 = vld [vmem:[%s888] sm:$0xf]
  %v890 = vlaneseq
  %v891 = vshrl.u32 %v890, 7
  %v892 = vsub.s32 0, %v891
  %v893 = vrot.slane %v852, %v892
  %v895 = vsel %vm39, %v887, 0
  %v898 = vsel %vm98, %v889, 0
  %900 = vmatprep.subr.mxu0 0.0
  %901 = vmatpush1.msra.mxu0 %v898
  %902 = vmatprep.subr.mxu0 0.0
  %903 = vmatpush1.msra.mxu0 0.0
  %904 = vmatprep.subr.mxu0 0.0
  %905 = vmatpush1.msra.mxu0 0.0
  %906 = vmatprep.subr.mxu0 0.0
  %907 = vmatpush1.msra.mxu0 0.0
  %908 = vmatprep.subr.mxu0 0.0
  %909 = vmatpush1.msra.mxu0 0.0
  %910 = vmatprep.subr.mxu0 0.0
  %911 = vmatpush1.msra.mxu0 0.0
  %912 = vmatprep.subr.mxu0 0.0
  %913 = vmatpush1.msra.mxu0 0.0
  %914 = vmatprep.subr.mxu0 0.0
  %915 = vmatpush1.msra.mxu0 0.0
  %916 = vmatprep.subr.mxu0 0.0
  %917 = vmatpush1.msra.mxu0 0.0
  %918 = vmatprep.subr.mxu0 0.0
  %919 = vmatpush1.msra.mxu0 0.0
  %920 = vmatprep.subr.mxu0 0.0
  %921 = vmatpush1.msra.mxu0 0.0
  %922 = vmatprep.subr.mxu0 0.0
  %923 = vmatpush1.msra.mxu0 0.0
  %924 = vmatprep.subr.mxu0 0.0
  %925 = vmatpush1.msra.mxu0 0.0
  %926 = vmatprep.subr.mxu0 0.0
  %927 = vmatpush1.msra.mxu0 0.0
  %928 = vmatprep.subr.mxu0 0.0
  %929 = vmatpush1.msra.mxu0 0.0
  %930 = vmatprep.subr.mxu0 0.0
  %931 = vmatpush1.msra.mxu0 0.0
  %932 = vmatprep.subr.mxu0 0.0
  %933 = vmatpush1.msra.mxu0 0.0
  %934 = vmatprep.subr.mxu0 0.0
  %935 = vmatpush1.msra.mxu0 0.0
  %936 = vmatprep.subr.mxu0 0.0
  %937 = vmatpush1.msra.mxu0 0.0
  %938 = vmatprep.subr.mxu0 0.0
  %939 = vmatpush1.msra.mxu0 0.0
  %940 = vmatprep.subr.mxu0 0.0
  %941 = vmatpush1.msra.mxu0 0.0
  %942 = vmatprep.subr.mxu0 0.0
  %943 = vmatpush1.msra.mxu0 0.0
  %944 = vmatprep.subr.mxu0 0.0
  %945 = vmatpush1.msra.mxu0 0.0
  %946 = vmatprep.subr.mxu0 0.0
  %947 = vmatpush1.msra.mxu0 0.0
  %948 = vmatprep.subr.mxu0 0.0
  %949 = vmatpush1.msra.mxu0 0.0
  %950 = vmatprep.subr.mxu0 0.0
  %951 = vmatpush1.msra.mxu0 0.0
  %952 = vmatprep.subr.mxu0 0.0
  %953 = vmatpush1.msra.mxu0 0.0
  %954 = vmatprep.subr.mxu0 0.0
  %955 = vmatpush1.msra.mxu0 0.0
  %956 = vmatprep.subr.mxu0 0.0
  %957 = vmatpush1.msra.mxu0 0.0
  %958 = vmatprep.subr.mxu0 0.0
  %959 = vmatpush1.msra.mxu0 0.0
  %960 = vmatprep.subr.mxu0 0.0
  %961 = vmatpush1.msra.mxu0 0.0
  %962 = vmatprep.subr.mxu0 0.0
  %963 = vmatpush1.msra.mxu0 0.0
  %964 = vmatprep.mubr.f32.mxu0 0.0
  %965 = vmatmul.mubr.f32.gmra.mrb[0].mxu0 %v895
  %v966 = vpop.f32.mrb[0].mxu0
  %v967 = vadd.f32 %v893, %v966
  %v968 = vpop.f32.mrb[0].mxu0
  %969 = vdwg.mxu0
  %v970 = vsel %vm172, %v967, 0.0
  %v971 = vrot.slane %v970, 4
  %v972 = vadd.f32 %v970, %v971
  %v973 = vrot.slane %v972, 2
  %v974 = vadd.f32 %v972, %v973
  %v975 = vrot.slane %v974, 1
  %v976 = vadd.f32 %v974, %v975
  %v977 = vmul.f32 %v976, %v63
  %v978 = vmul.f32 %v967, %v967
  %v979 = vsel %vm172, %v978, 0.0
  %v980 = vrot.slane %v979, 4
  %v981 = vadd.f32 %v979, %v980
  %v982 = vrot.slane %v981, 2
  %v983 = vadd.f32 %v981, %v982
  %v984 = vrot.slane %v983, 1
  %v985 = vadd.f32 %v983, %v984
  %v986 = vmul.f32 %v985, %v63
  %v987 = vmul.f32 %v977, %v977
  %v988 = vsub.f32 %v986, %v987
  %v989 = vsub.f32 %v967, %v977
  %v990 = vadd.f32 %v988, 1e-06
  %v991 = vrsqrt.pop %v990
  %v992 = vmul.f32 %v989, %v991
  %v993 = vlaneseq
  %v994 = vshrl.u32 %v993, 7
  %v995 = vsub.s32 1, %v994
  %v996 = vrot.slane %v848, %v995
  %v997 = vmul.f32 %v992, %v996
  %v998 = vlaneseq
  %v999 = vshrl.u32 %v998, 7
  %v1000 = vsub.s32 1, %v999
  %v1001 = vrot.slane %v850, %v1000
  %v1002 = vadd.f32 %v997, %v1001
  %v1003 = vmax.f32 %v1002, 0.0
  %s1004 = scalar_lea.vmem %s5, 32
  %v1005 = vld [vmem:[%s1004] sm:$0xff]
  %v1006 = vld [vmem:[%s1004 + $0x8] sm:$0xff]
  %v1007 = vlaneseq
  %v1008 = vshrl.u32 %v1007, 7
  %v1009 = vsub.s32 1, %v1008
  %v1010 = vrot.slane %v852, %v1009
  %v1012 = vsel %vm172, %v1003, 0
  %1014 = vmatprep.subr.mxu0 0.0
  %1015 = vmatpush1.msra.mxu0 %v1005
  %1016 = vmatprep.subr.mxu0 0.0
  %1017 = vmatpush1.msra.mxu0 %v1006
  %1018 = vmatprep.subr.mxu0 0.0
  %1019 = vmatpush1.msra.mxu0 0.0
  %1020 = vmatprep.subr.mxu0 0.0
  %1021 = vmatpush1.msra.mxu0 0.0
  %1022 = vmatprep.subr.mxu0 0.0
  %1023 = vmatpush1.msra.mxu0 0.0
  %1024 = vmatprep.subr.mxu0 0.0
  %1025 = vmatpush1.msra.mxu0 0.0
  %1026 = vmatprep.subr.mxu0 0.0
  %1027 = vmatpush1.msra.mxu0 0.0
  %1028 = vmatprep.subr.mxu0 0.0
  %1029 = vmatpush1.msra.mxu0 0.0
  %1030 = vmatprep.subr.mxu0 0.0
  %1031 = vmatpush1.msra.mxu0 0.0
  %1032 = vmatprep.subr.mxu0 0.0
  %1033 = vmatpush1.msra.mxu0 0.0
  %1034 = vmatprep.subr.mxu0 0.0
  %1035 = vmatpush1.msra.mxu0 0.0
  %1036 = vmatprep.subr.mxu0 0.0
  %1037 = vmatpush1.msra.mxu0 0.0
  %1038 = vmatprep.subr.mxu0 0.0
  %1039 = vmatpush1.msra.mxu0 0.0
  %1040 = vmatprep.subr.mxu0 0.0
  %1041 = vmatpush1.msra.mxu0 0.0
  %1042 = vmatprep.subr.mxu0 0.0
  %1043 = vmatpush1.msra.mxu0 0.0
  %1044 = vmatprep.subr.mxu0 0.0
  %1045 = vmatpush1.msra.mxu0 0.0
  %1046 = vmatprep.subr.mxu0 0.0
  %1047 = vmatpush1.msra.mxu0 0.0
  %1048 = vmatprep.subr.mxu0 0.0
  %1049 = vmatpush1.msra.mxu0 0.0
  %1050 = vmatprep.subr.mxu0 0.0
  %1051 = vmatpush1.msra.mxu0 0.0
  %1052 = vmatprep.subr.mxu0 0.0
  %1053 = vmatpush1.msra.mxu0 0.0
  %1054 = vmatprep.subr.mxu0 0.0
  %1055 = vmatpush1.msra.mxu0 0.0
  %1056 = vmatprep.subr.mxu0 0.0
  %1057 = vmatpush1.msra.mxu0 0.0
  %1058 = vmatprep.subr.mxu0 0.0
  %1059 = vmatpush1.msra.mxu0 0.0
  %1060 = vmatprep.subr.mxu0 0.0
  %1061 = vmatpush1.msra.mxu0 0.0
  %1062 = vmatprep.subr.mxu0 0.0
  %1063 = vmatpush1.msra.mxu0 0.0
  %1064 = vmatprep.subr.mxu0 0.0
  %1065 = vmatpush1.msra.mxu0 0.0
  %1066 = vmatprep.subr.mxu0 0.0
  %1067 = vmatpush1.msra.mxu0 0.0
  %1068 = vmatprep.subr.mxu0 0.0
  %1069 = vmatpush1.msra.mxu0 0.0
  %1070 = vmatprep.subr.mxu0 0.0
  %1071 = vmatpush1.msra.mxu0 0.0
  %1072 = vmatprep.subr.mxu0 0.0
  %1073 = vmatpush1.msra.mxu0 0.0
  %1074 = vmatprep.subr.mxu0 0.0
  %1075 = vmatpush1.msra.mxu0 0.0
  %1076 = vmatprep.subr.mxu0 0.0
  %1077 = vmatpush1.msra.mxu0 0.0
  %1078 = vmatprep.mubr.f32.mxu0 0.0
  %1079 = vmatmul.mubr.f32.gmra.mrb[0].mxu0 %v1012
  %v1080 = vpop.f32.mrb[0].mxu0
  %v1081 = vadd.f32 %v1010, %v1080
  %v1082 = vpop.f32.mrb[0].mxu0
  %1083 = vdwg.mxu0
  %v1084 = vsel %vm172, %v1081, 0.0
  %v1085 = vrot.slane %v1084, 4
  %v1086 = vadd.f32 %v1084, %v1085
  %v1087 = vrot.slane %v1086, 2
  %v1088 = vadd.f32 %v1086, %v1087
  %v1089 = vrot.slane %v1088, 1
  %v1090 = vadd.f32 %v1088, %v1089
  %v1091 = vmul.f32 %v1090, %v63
  %v1092 = vmul.f32 %v1081, %v1081
  %v1093 = vsel %vm172, %v1092, 0.0
  %v1094 = vrot.slane %v1093, 4
  %v1095 = vadd.f32 %v1093, %v1094
  %v1096 = vrot.slane %v1095, 2
  %v1097 = vadd.f32 %v1095, %v1096
  %v1098 = vrot.slane %v1097, 1
  %v1099 = vadd.f32 %v1097, %v1098
  %v1100 = vmul.f32 %v1099, %v63
  %v1101 = vmul.f32 %v1091, %v1091
  %v1102 = vsub.f32 %v1100, %v1101
  %v1103 = vsub.f32 %v1081, %v1091
  %v1104 = vadd.f32 %v1102, 1e-06
  %v1105 = vrsqrt.pop %v1104
  %v1106 = vmul.f32 %v1103, %v1105
  %v1107 = vlaneseq
  %v1108 = vshrl.u32 %v1107, 7
  %v1109 = vsub.s32 2, %v1108
  %v1110 = vrot.slane %v848, %v1109
  %v1111 = vmul.f32 %v1106, %v1110
  %v1112 = vlaneseq
  %v1113 = vshrl.u32 %v1112, 7
  %v1114 = vsub.s32 2, %v1113
  %v1115 = vrot.slane %v850, %v1114
  %v1116 = vadd.f32 %v1111, %v1115
  %v1117 = vmax.f32 %v1116, 0.0
  %s1118 = scalar_lea.vmem %s6, 32
  %v1119 = vld [vmem:[%s1118] sm:$0xff]
  %v1120 = vld [vmem:[%s1118 + $0x8] sm:$0xff]
  %v1121 = vlaneseq
  %v1122 = vshrl.u32 %v1121, 7
  %v1123 = vsub.s32 2, %v1122
  %v1124 = vrot.slane %v852, %v1123
  %v1126 = vsel %vm172, %v1117, 0
  %1128 = vmatprep.subr.mxu0 0.0
  %1129 = vmatpush1.msra.mxu0 %v1119
  %1130 = vmatprep.subr.mxu0 0.0
  %1131 = vmatpush1.msra.mxu0 %v1120
  %1132 = vmatprep.subr.mxu0 0.0
  %1133 = vmatpush1.msra.mxu0 0.0
  %1134 = vmatprep.subr.mxu0 0.0
  %1135 = vmatpush1.msra.mxu0 0.0
  %1136 = vmatprep.subr.mxu0 0.0
  %1137 = vmatpush1.msra.mxu0 0.0
  %1138 = vmatprep.subr.mxu0 0.0
  %1139 = vmatpush1.msra.mxu0 0.0
  %1140 = vmatprep.subr.mxu0 0.0
  %1141 = vmatpush1.msra.mxu0 0.0
  %1142 = vmatprep.subr.mxu0 0.0
  %1143 = vmatpush1.msra.mxu0 0.0
  %1144 = vmatprep.subr.mxu0 0.0
  %1145 = vmatpush1.msra.mxu0 0.0
  %1146 = vmatprep.subr.mxu0 0.0
  %1147 = vmatpush1.msra.mxu0 0.0
  %1148 = vmatprep.subr.mxu0 0.0
  %1149 = vmatpush1.msra.mxu0 0.0
  %1150 = vmatprep.subr.mxu0 0.0
  %1151 = vmatpush1.msra.mxu0 0.0
  %1152 = vmatprep.subr.mxu0 0.0
  %1153 = vmatpush1.msra.mxu0 0.0
  %1154 = vmatprep.subr.mxu0 0.0
  %1155 = vmatpush1.msra.mxu0 0.0
  %1156 = vmatprep.subr.mxu0 0.0
  %1157 = vmatpush1.msra.mxu0 0.0
  %1158 = vmatprep.subr.mxu0 0.0
  %1159 = vmatpush1.msra.mxu0 0.0
  %1160 = vmatprep.subr.mxu0 0.0
  %1161 = vmatpush1.msra.mxu0 0.0
  %1162 = vmatprep.subr.mxu0 0.0
  %1163 = vmatpush1.msra.mxu0 0.0
  %1164 = vmatprep.subr.mxu0 0.0
  %1165 = vmatpush1.msra.mxu0 0.0
  %1166 = vmatprep.subr.mxu0 0.0
  %1167 = vmatpush1.msra.mxu0 0.0
  %1168 = vmatprep.subr.mxu0 0.0
  %1169 = vmatpush1.msra.mxu0 0.0
  %1170 = vmatprep.subr.mxu0 0.0
  %1171 = vmatpush1.msra.mxu0 0.0
  %1172 = vmatprep.subr.mxu0 0.0
  %1173 = vmatpush1.msra.mxu0 0.0
  %1174 = vmatprep.subr.mxu0 0.0
  %1175 = vmatpush1.msra.mxu0 0.0
  %1176 = vmatprep.subr.mxu0 0.0
  %1177 = vmatpush1.msra.mxu0 0.0
  %1178 = vmatprep.subr.mxu0 0.0
  %1179 = vmatpush1.msra.mxu0 0.0
  %1180 = vmatprep.subr.mxu0 0.0
  %1181 = vmatpush1.msra.mxu0 0.0
  %1182 = vmatprep.subr.mxu0 0.0
  %1183 = vmatpush1.msra.mxu0 0.0
  %1184 = vmatprep.subr.mxu0 0.0
  %1185 = vmatpush1.msra.mxu0 0.0
  %1186 = vmatprep.subr.mxu0 0.0
  %1187 = vmatpush1.msra.mxu0 0.0
  %1188 = vmatprep.subr.mxu0 0.0
  %1189 = vmatpush1.msra.mxu0 0.0
  %1190 = vmatprep.subr.mxu0 0.0
  %1191 = vmatpush1.msra.mxu0 0.0
  %1192 = vmatprep.mubr.f32.mxu0 0.0
  %1193 = vmatmul.mubr.f32.gmra.mrb[0].mxu0 %v1126
  %v1194 = vpop.f32.mrb[0].mxu0
  %v1195 = vadd.f32 %v1124, %v1194
  %v1196 = vpop.f32.mrb[0].mxu0
  %1197 = vdwg.mxu0
  %v1198 = vsel %vm39, %v1195, 0.0
  %v1199 = vrot.slane %v1198, 4
  %v1200 = vadd.f32 %v1198, %v1199
  %v1201 = vrot.slane %v1200, 2
  %v1202 = vadd.f32 %v1200, %v1201
  %v1203 = vrot.slane %v1202, 1
  %v1204 = vadd.f32 %v1202, %v1203
  %v1205 = vmul.f32 %v1204, %v63
  %v1206 = vmul.f32 %v1195, %v1195
  %v1207 = vsel %vm39, %v1206, 0.0
  %v1208 = vrot.slane %v1207, 4
  %v1209 = vadd.f32 %v1207, %v1208
  %v1210 = vrot.slane %v1209, 2
  %v1211 = vadd.f32 %v1209, %v1210
  %v1212 = vrot.slane %v1211, 1
  %v1213 = vadd.f32 %v1211, %v1212
  %v1214 = vmul.f32 %v1213, %v63
  %v1215 = vmul.f32 %v1205, %v1205
  %v1216 = vsub.f32 %v1214, %v1215
  %v1217 = vsub.f32 %v1195, %v1205
  %v1218 = vadd.f32 %v1216, 1e-06
  %v1219 = vrsqrt.pop %v1218
  %v1220 = vmul.f32 %v1217, %v1219
  %v1221 = vlaneseq
  %v1222 = vshrl.u32 %v1221, 7
  %v1223 = vsub.s32 3, %v1222
  %v1224 = vrot.slane %v848, %v1223
  %v1225 = vmul.f32 %v1220, %v1224
  %v1226 = vlaneseq
  %v1227 = vshrl.u32 %v1226, 7
  %v1228 = vsub.s32 3, %v1227
  %v1229 = vrot.slane %v850, %v1228
  %v1230 = vadd.f32 %v1225, %v1229
  %v1231 = vmul.f32 %v1230, %v432
  %s1232 = scalar_lea.vmem %s0, 24
  %v1233 = vld [vmem:[%s1232] sm:$0xff]
  %v1234 = vmul.f32 %v1231, %v1231
  %v1235 = vsel %vm39, %v1234, 0.0
  %1236 = vadd.xlane.f32.xlu0 %v1235
  %v1237 = vpop.xlane.xlu0 %1236
  %v1238 = vmul.f32 %v1237, -1.0
  %v1239 = vmul.f32 %v1238, 0.2
  %v1240 = vsub.f32 %v846, %v1239
  %v1241 = vmul.f32 %v1231, %v1233
  %v1242 = vsel %vm39, %v1241, 0.0
  %1243 = vadd.xlane.f32.xlu0 %v1242
  %v1244 = vpop.xlane.xlu0 %1243
  %v1245 = vadd.f32 %v1240, %v1244
  %s1246 = scalar_lea.vmem %s8, 12
  %v1247 = vld [vmem:[%s1246] sm:$0xf]
  %s1248 = scalar_lea.vmem %s9, 12
  %v1249 = vld [vmem:[%s1248] sm:$0xf]
  %s1250 = scalar_lea.vmem %s7, 12
  %v1251 = vld [vmem:[%s1250] sm:$0x7]
  %s1252 = scalar_lea.vmem %s1, 32
  %v1253 = vld [vmem:[%s1252] sm:$0xff]
  %v1254 = vsel %vm39, %v1253, 0.0
  %v1255 = vrot.slane %v1254, 4
  %v1256 = vadd.f32 %v1254, %v1255
  %v1257 = vrot.slane %v1256, 2
  %v1258 = vadd.f32 %v1256, %v1257
  %v1259 = vrot.slane %v1258, 1
  %v1260 = vadd.f32 %v1258, %v1259
  %v1261 = vmul.f32 %v1260, %v63
  %v1262 = vmul.f32 %v1253, %v1253
  %v1263 = vsel %vm39, %v1262, 0.0
  %v1264 = vrot.slane %v1263, 4
  %v1265 = vadd.f32 %v1263, %v1264
  %v1266 = vrot.slane %v1265, 2
  %v1267 = vadd.f32 %v1265, %v1266
  %v1268 = vrot.slane %v1267, 1
  %v1269 = vadd.f32 %v1267, %v1268
  %v1270 = vmul.f32 %v1269, %v63
  %v1271 = vmul.f32 %v1261, %v1261
  %v1272 = vsub.f32 %v1270, %v1271
  %v1273 = vsub.f32 %v1253, %v1261
  %v1274 = vadd.f32 %v1272, 1e-06
  %v1275 = vrsqrt.pop %v1274
  %v1276 = vmul.f32 %v1273, %v1275
  %v1277 = vlaneseq
  %v1278 = vshrl.u32 %v1277, 7
  %v1279 = vsub.s32 0, %v1278
  %v1280 = vrot.slane %v1247, %v1279
  %v1281 = vmul.f32 %v1276, %v1280
  %v1282 = vlaneseq
  %v1283 = vshrl.u32 %v1282, 7
  %v1284 = vsub.s32 0, %v1283
  %v1285 = vrot.slane %v1249, %v1284
  %v1286 = vadd.f32 %v1281, %v1285
  %s1287 = scalar_lea.vmem %s4, 12
  %v1288 = vld [vmem:[%s1287] sm:$0xf]
  %v1289 = vlaneseq
  %v1290 = vshrl.u32 %v1289, 7
  %v1291 = vsub.s32 0, %v1290
  %v1292 = vrot.slane %v1251, %v1291
  %v1294 = vsel %vm39, %v1286, 0
  %v1297 = vsel %vm98, %v1288, 0
  %1299 = vmatprep.subr.mxu0 0.0
  %1300 = vmatpush1.msra.mxu0 %v1297
  %1301 = vmatprep.subr.mxu0 0.0
  %1302 = vmatpush1.msra.mxu0 0.0
  %1303 = vmatprep.subr.mxu0 0.0
  %1304 = vmatpush1.msra.mxu0 0.0
  %1305 = vmatprep.subr.mxu0 0.0
  %1306 = vmatpush1.msra.mxu0 0.0
  %1307 = vmatprep.subr.mxu0 0.0
  %1308 = vmatpush1.msra.mxu0 0.0
  %1309 = vmatprep.subr.mxu0 0.0
  %1310 = vmatpush1.msra.mxu0 0.0
  %1311 = vmatprep.subr.mxu0 0.0
  %1312 = vmatpush1.msra.mxu0 0.0
  %1313 = vmatprep.subr.mxu0 0.0
  %1314 = vmatpush1.msra.mxu0 0.0
  %1315 = vmatprep.subr.mxu0 0.0
  %1316 = vmatpush1.msra.mxu0 0.0
  %1317 = vmatprep.subr.mxu0 0.0
  %1318 = vmatpush1.msra.mxu0 0.0
  %1319 = vmatprep.subr.mxu0 0.0
  %1320 = vmatpush1.msra.mxu0 0.0
  %1321 = vmatprep.subr.mxu0 0.0
  %1322 = vmatpush1.msra.mxu0 0.0
  %1323 = vmatprep.subr.mxu0 0.0
  %1324 = vmatpush1.msra.mxu0 0.0
  %1325 = vmatprep.subr.mxu0 0.0
  %1326 = vmatpush1.msra.mxu0 0.0
  %1327 = vmatprep.subr.mxu0 0.0
  %1328 = vmatpush1.msra.mxu0 0.0
  %1329 = vmatprep.subr.mxu0 0.0
  %1330 = vmatpush1.msra.mxu0 0.0
  %1331 = vmatprep.subr.mxu0 0.0
  %1332 = vmatpush1.msra.mxu0 0.0
  %1333 = vmatprep.subr.mxu0 0.0
  %1334 = vmatpush1.msra.mxu0 0.0
  %1335 = vmatprep.subr.mxu0 0.0
  %1336 = vmatpush1.msra.mxu0 0.0
  %1337 = vmatprep.subr.mxu0 0.0
  %1338 = vmatpush1.msra.mxu0 0.0
  %1339 = vmatprep.subr.mxu0 0.0
  %1340 = vmatpush1.msra.mxu0 0.0
  %1341 = vmatprep.subr.mxu0 0.0
  %1342 = vmatpush1.msra.mxu0 0.0
  %1343 = vmatprep.subr.mxu0 0.0
  %1344 = vmatpush1.msra.mxu0 0.0
  %1345 = vmatprep.subr.mxu0 0.0
  %1346 = vmatpush1.msra.mxu0 0.0
  %1347 = vmatprep.subr.mxu0 0.0
  %1348 = vmatpush1.msra.mxu0 0.0
  %1349 = vmatprep.subr.mxu0 0.0
  %1350 = vmatpush1.msra.mxu0 0.0
  %1351 = vmatprep.subr.mxu0 0.0
  %1352 = vmatpush1.msra.mxu0 0.0
  %1353 = vmatprep.subr.mxu0 0.0
  %1354 = vmatpush1.msra.mxu0 0.0
  %1355 = vmatprep.subr.mxu0 0.0
  %1356 = vmatpush1.msra.mxu0 0.0
  %1357 = vmatprep.subr.mxu0 0.0
  %1358 = vmatpush1.msra.mxu0 0.0
  %1359 = vmatprep.subr.mxu0 0.0
  %1360 = vmatpush1.msra.mxu0 0.0
  %1361 = vmatprep.subr.mxu0 0.0
  %1362 = vmatpush1.msra.mxu0 0.0
  %1363 = vmatprep.mubr.f32.mxu0 0.0
  %1364 = vmatmul.mubr.f32.gmra.mrb[0].mxu0 %v1294
  %v1365 = vpop.f32.mrb[0].mxu0
  %v1366 = vadd.f32 %v1292, %v1365
  %v1367 = vpop.f32.mrb[0].mxu0
  %1368 = vdwg.mxu0
  %v1369 = vsel %vm172, %v1366, 0.0
  %v1370 = vrot.slane %v1369, 4
  %v1371 = vadd.f32 %v1369, %v1370
  %v1372 = vrot.slane %v1371, 2
  %v1373 = vadd.f32 %v1371, %v1372
  %v1374 = vrot.slane %v1373, 1
  %v1375 = vadd.f32 %v1373, %v1374
  %v1376 = vmul.f32 %v1375, %v63
  %v1377 = vmul.f32 %v1366, %v1366
  %v1378 = vsel %vm172, %v1377, 0.0
  %v1379 = vrot.slane %v1378, 4
  %v1380 = vadd.f32 %v1378, %v1379
  %v1381 = vrot.slane %v1380, 2
  %v1382 = vadd.f32 %v1380, %v1381
  %v1383 = vrot.slane %v1382, 1
  %v1384 = vadd.f32 %v1382, %v1383
  %v1385 = vmul.f32 %v1384, %v63
  %v1386 = vmul.f32 %v1376, %v1376
  %v1387 = vsub.f32 %v1385, %v1386
  %v1388 = vsub.f32 %v1366, %v1376
  %v1389 = vadd.f32 %v1387, 1e-06
  %v1390 = vrsqrt.pop %v1389
  %v1391 = vmul.f32 %v1388, %v1390
  %v1392 = vlaneseq
  %v1393 = vshrl.u32 %v1392, 7
  %v1394 = vsub.s32 1, %v1393
  %v1395 = vrot.slane %v1247, %v1394
  %v1396 = vmul.f32 %v1391, %v1395
  %v1397 = vlaneseq
  %v1398 = vshrl.u32 %v1397, 7
  %v1399 = vsub.s32 1, %v1398
  %v1400 = vrot.slane %v1249, %v1399
  %v1401 = vadd.f32 %v1396, %v1400
  %v1402 = vmax.f32 %v1401, 0.0
  %s1403 = scalar_lea.vmem %s5, 48
  %v1404 = vld [vmem:[%s1403] sm:$0xff]
  %v1405 = vld [vmem:[%s1403 + $0x8] sm:$0xff]
  %v1406 = vlaneseq
  %v1407 = vshrl.u32 %v1406, 7
  %v1408 = vsub.s32 1, %v1407
  %v1409 = vrot.slane %v1251, %v1408
  %v1411 = vsel %vm172, %v1402, 0
  %1413 = vmatprep.subr.mxu0 0.0
  %1414 = vmatpush1.msra.mxu0 %v1404
  %1415 = vmatprep.subr.mxu0 0.0
  %1416 = vmatpush1.msra.mxu0 %v1405
  %1417 = vmatprep.subr.mxu0 0.0
  %1418 = vmatpush1.msra.mxu0 0.0
  %1419 = vmatprep.subr.mxu0 0.0
  %1420 = vmatpush1.msra.mxu0 0.0
  %1421 = vmatprep.subr.mxu0 0.0
  %1422 = vmatpush1.msra.mxu0 0.0
  %1423 = vmatprep.subr.mxu0 0.0
  %1424 = vmatpush1.msra.mxu0 0.0
  %1425 = vmatprep.subr.mxu0 0.0
  %1426 = vmatpush1.msra.mxu0 0.0
  %1427 = vmatprep.subr.mxu0 0.0
  %1428 = vmatpush1.msra.mxu0 0.0
  %1429 = vmatprep.subr.mxu0 0.0
  %1430 = vmatpush1.msra.mxu0 0.0
  %1431 = vmatprep.subr.mxu0 0.0
  %1432 = vmatpush1.msra.mxu0 0.0
  %1433 = vmatprep.subr.mxu0 0.0
  %1434 = vmatpush1.msra.mxu0 0.0
  %1435 = vmatprep.subr.mxu0 0.0
  %1436 = vmatpush1.msra.mxu0 0.0
  %1437 = vmatprep.subr.mxu0 0.0
  %1438 = vmatpush1.msra.mxu0 0.0
  %1439 = vmatprep.subr.mxu0 0.0
  %1440 = vmatpush1.msra.mxu0 0.0
  %1441 = vmatprep.subr.mxu0 0.0
  %1442 = vmatpush1.msra.mxu0 0.0
  %1443 = vmatprep.subr.mxu0 0.0
  %1444 = vmatpush1.msra.mxu0 0.0
  %1445 = vmatprep.subr.mxu0 0.0
  %1446 = vmatpush1.msra.mxu0 0.0
  %1447 = vmatprep.subr.mxu0 0.0
  %1448 = vmatpush1.msra.mxu0 0.0
  %1449 = vmatprep.subr.mxu0 0.0
  %1450 = vmatpush1.msra.mxu0 0.0
  %1451 = vmatprep.subr.mxu0 0.0
  %1452 = vmatpush1.msra.mxu0 0.0
  %1453 = vmatprep.subr.mxu0 0.0
  %1454 = vmatpush1.msra.mxu0 0.0
  %1455 = vmatprep.subr.mxu0 0.0
  %1456 = vmatpush1.msra.mxu0 0.0
  %1457 = vmatprep.subr.mxu0 0.0
  %1458 = vmatpush1.msra.mxu0 0.0
  %1459 = vmatprep.subr.mxu0 0.0
  %1460 = vmatpush1.msra.mxu0 0.0
  %1461 = vmatprep.subr.mxu0 0.0
  %1462 = vmatpush1.msra.mxu0 0.0
  %1463 = vmatprep.subr.mxu0 0.0
  %1464 = vmatpush1.msra.mxu0 0.0
  %1465 = vmatprep.subr.mxu0 0.0
  %1466 = vmatpush1.msra.mxu0 0.0
  %1467 = vmatprep.subr.mxu0 0.0
  %1468 = vmatpush1.msra.mxu0 0.0
  %1469 = vmatprep.subr.mxu0 0.0
  %1470 = vmatpush1.msra.mxu0 0.0
  %1471 = vmatprep.subr.mxu0 0.0
  %1472 = vmatpush1.msra.mxu0 0.0
  %1473 = vmatprep.subr.mxu0 0.0
  %1474 = vmatpush1.msra.mxu0 0.0
  %1475 = vmatprep.subr.mxu0 0.0
  %1476 = vmatpush1.msra.mxu0 0.0
  %1477 = vmatprep.mubr.f32.mxu0 0.0
  %1478 = vmatmul.mubr.f32.gmra.mrb[0].mxu0 %v1411
  %v1479 = vpop.f32.mrb[0].mxu0
  %v1480 = vadd.f32 %v1409, %v1479
  %v1481 = vpop.f32.mrb[0].mxu0
  %1482 = vdwg.mxu0
  %v1483 = vsel %vm172, %v1480, 0.0
  %v1484 = vrot.slane %v1483, 4
  %v1485 = vadd.f32 %v1483, %v1484
  %v1486 = vrot.slane %v1485, 2
  %v1487 = vadd.f32 %v1485, %v1486
  %v1488 = vrot.slane %v1487, 1
  %v1489 = vadd.f32 %v1487, %v1488
  %v1490 = vmul.f32 %v1489, %v63
  %v1491 = vmul.f32 %v1480, %v1480
  %v1492 = vsel %vm172, %v1491, 0.0
  %v1493 = vrot.slane %v1492, 4
  %v1494 = vadd.f32 %v1492, %v1493
  %v1495 = vrot.slane %v1494, 2
  %v1496 = vadd.f32 %v1494, %v1495
  %v1497 = vrot.slane %v1496, 1
  %v1498 = vadd.f32 %v1496, %v1497
  %v1499 = vmul.f32 %v1498, %v63
  %v1500 = vmul.f32 %v1490, %v1490
  %v1501 = vsub.f32 %v1499, %v1500
  %v1502 = vsub.f32 %v1480, %v1490
  %v1503 = vadd.f32 %v1501, 1e-06
  %v1504 = vrsqrt.pop %v1503
  %v1505 = vmul.f32 %v1502, %v1504
  %v1506 = vlaneseq
  %v1507 = vshrl.u32 %v1506, 7
  %v1508 = vsub.s32 2, %v1507
  %v1509 = vrot.slane %v1247, %v1508
  %v1510 = vmul.f32 %v1505, %v1509
  %v1511 = vlaneseq
  %v1512 = vshrl.u32 %v1511, 7
  %v1513 = vsub.s32 2, %v1512
  %v1514 = vrot.slane %v1249, %v1513
  %v1515 = vadd.f32 %v1510, %v1514
  %v1516 = vmax.f32 %v1515, 0.0
  %s1517 = scalar_lea.vmem %s6, 48
  %v1518 = vld [vmem:[%s1517] sm:$0xff]
  %v1519 = vld [vmem:[%s1517 + $0x8] sm:$0xff]
  %v1520 = vlaneseq
  %v1521 = vshrl.u32 %v1520, 7
  %v1522 = vsub.s32 2, %v1521
  %v1523 = vrot.slane %v1251, %v1522
  %v1525 = vsel %vm172, %v1516, 0
  %1527 = vmatprep.subr.mxu0 0.0
  %1528 = vmatpush1.msra.mxu0 %v1518
  %1529 = vmatprep.subr.mxu0 0.0
  %1530 = vmatpush1.msra.mxu0 %v1519
  %1531 = vmatprep.subr.mxu0 0.0
  %1532 = vmatpush1.msra.mxu0 0.0
  %1533 = vmatprep.subr.mxu0 0.0
  %1534 = vmatpush1.msra.mxu0 0.0
  %1535 = vmatprep.subr.mxu0 0.0
  %1536 = vmatpush1.msra.mxu0 0.0
  %1537 = vmatprep.subr.mxu0 0.0
  %1538 = vmatpush1.msra.mxu0 0.0
  %1539 = vmatprep.subr.mxu0 0.0
  %1540 = vmatpush1.msra.mxu0 0.0
  %1541 = vmatprep.subr.mxu0 0.0
  %1542 = vmatpush1.msra.mxu0 0.0
  %1543 = vmatprep.subr.mxu0 0.0
  %1544 = vmatpush1.msra.mxu0 0.0
  %1545 = vmatprep.subr.mxu0 0.0
  %1546 = vmatpush1.msra.mxu0 0.0
  %1547 = vmatprep.subr.mxu0 0.0
  %1548 = vmatpush1.msra.mxu0 0.0
  %1549 = vmatprep.subr.mxu0 0.0
  %1550 = vmatpush1.msra.mxu0 0.0
  %1551 = vmatprep.subr.mxu0 0.0
  %1552 = vmatpush1.msra.mxu0 0.0
  %1553 = vmatprep.subr.mxu0 0.0
  %1554 = vmatpush1.msra.mxu0 0.0
  %1555 = vmatprep.subr.mxu0 0.0
  %1556 = vmatpush1.msra.mxu0 0.0
  %1557 = vmatprep.subr.mxu0 0.0
  %1558 = vmatpush1.msra.mxu0 0.0
  %1559 = vmatprep.subr.mxu0 0.0
  %1560 = vmatpush1.msra.mxu0 0.0
  %1561 = vmatprep.subr.mxu0 0.0
  %1562 = vmatpush1.msra.mxu0 0.0
  %1563 = vmatprep.subr.mxu0 0.0
  %1564 = vmatpush1.msra.mxu0 0.0
  %1565 = vmatprep.subr.mxu0 0.0
  %1566 = vmatpush1.msra.mxu0 0.0
  %1567 = vmatprep.subr.mxu0 0.0
  %1568 = vmatpush1.msra.mxu0 0.0
  %1569 = vmatprep.subr.mxu0 0.0
  %1570 = vmatpush1.msra.mxu0 0.0
  %1571 = vmatprep.subr.mxu0 0.0
  %1572 = vmatpush1.msra.mxu0 0.0
  %1573 = vmatprep.subr.mxu0 0.0
  %1574 = vmatpush1.msra.mxu0 0.0
  %1575 = vmatprep.subr.mxu0 0.0
  %1576 = vmatpush1.msra.mxu0 0.0
  %1577 = vmatprep.subr.mxu0 0.0
  %1578 = vmatpush1.msra.mxu0 0.0
  %1579 = vmatprep.subr.mxu0 0.0
  %1580 = vmatpush1.msra.mxu0 0.0
  %1581 = vmatprep.subr.mxu0 0.0
  %1582 = vmatpush1.msra.mxu0 0.0
  %1583 = vmatprep.subr.mxu0 0.0
  %1584 = vmatpush1.msra.mxu0 0.0
  %1585 = vmatprep.subr.mxu0 0.0
  %1586 = vmatpush1.msra.mxu0 0.0
  %1587 = vmatprep.subr.mxu0 0.0
  %1588 = vmatpush1.msra.mxu0 0.0
  %1589 = vmatprep.subr.mxu0 0.0
  %1590 = vmatpush1.msra.mxu0 0.0
  %1591 = vmatprep.mubr.f32.mxu0 0.0
  %1592 = vmatmul.mubr.f32.gmra.mrb[0].mxu0 %v1525
  %v1593 = vpop.f32.mrb[0].mxu0
  %v1594 = vadd.f32 %v1523, %v1593
  %v1595 = vpop.f32.mrb[0].mxu0
  %1596 = vdwg.mxu0
  %v1597 = vsel %vm39, %v1594, 0.0
  %v1598 = vrot.slane %v1597, 4
  %v1599 = vadd.f32 %v1597, %v1598
  %v1600 = vrot.slane %v1599, 2
  %v1601 = vadd.f32 %v1599, %v1600
  %v1602 = vrot.slane %v1601, 1
  %v1603 = vadd.f32 %v1601, %v1602
  %v1604 = vmul.f32 %v1603, %v63
  %v1605 = vmul.f32 %v1594, %v1594
  %v1606 = vsel %vm39, %v1605, 0.0
  %v1607 = vrot.slane %v1606, 4
  %v1608 = vadd.f32 %v1606, %v1607
  %v1609 = vrot.slane %v1608, 2
  %v1610 = vadd.f32 %v1608, %v1609
  %v1611 = vrot.slane %v1610, 1
  %v1612 = vadd.f32 %v1610, %v1611
  %v1613 = vmul.f32 %v1612, %v63
  %v1614 = vmul.f32 %v1604, %v1604
  %v1615 = vsub.f32 %v1613, %v1614
  %v1616 = vsub.f32 %v1594, %v1604
  %v1617 = vadd.f32 %v1615, 1e-06
  %v1618 = vrsqrt.pop %v1617
  %v1619 = vmul.f32 %v1616, %v1618
  %v1620 = vlaneseq
  %v1621 = vshrl.u32 %v1620, 7
  %v1622 = vsub.s32 3, %v1621
  %v1623 = vrot.slane %v1247, %v1622
  %v1624 = vmul.f32 %v1619, %v1623
  %v1625 = vlaneseq
  %v1626 = vshrl.u32 %v1625, 7
  %v1627 = vsub.s32 3, %v1626
  %v1628 = vrot.slane %v1249, %v1627
  %v1629 = vadd.f32 %v1624, %v1628
  %v1630 = vmul.f32 %v1629, %v432
  %s1631 = scalar_lea.vmem %s0, 32
  %v1632 = vld [vmem:[%s1631] sm:$0xff]
  %v1633 = vmul.f32 %v1630, %v1630
  %v1634 = vsel %vm39, %v1633, 0.0
  %1635 = vadd.xlane.f32.xlu0 %v1634
  %v1636 = vpop.xlane.xlu0 %1635
  %v1637 = vmul.f32 %v1636, -1.0
  %v1638 = vmul.f32 %v1637, 0.2
  %v1639 = vsub.f32 %v1245, %v1638
  %v1640 = vmul.f32 %v1630, %v1632
  %v1641 = vsel %vm39, %v1640, 0.0
  %1642 = vadd.xlane.f32.xlu0 %v1641
  %v1643 = vpop.xlane.xlu0 %1642
  %v1644 = vadd.f32 %v1639, %v1643
  %vm1645 = vcmask 7168
  %1646 = vst.msk [vmem:[%s10] sm:$0xff] %vm1645, %v1644
  // Predicated region
  $region42: #{nonshared_model_forward.1} parent=0 // pred_check
    _
  $region43: #{nonshared_model_forward.1} parent=0 // pred_check_branch
    %1648 = sbr.rel (0) target = $region45
  $region44: #{nonshared_model_forward.1} parent=0 // pred_region
    _
  $region45: #{nonshared_model_forward.1} parent=0 // pred_fallthru
    _
  // Predicated region
  $region46: #{nonshared_model_forward.1} parent=0 // pred_check
    _
  $region47: #{nonshared_model_forward.1} parent=0 // pred_check_branch
    %1650 = sbr.rel (0) target = $region49
  $region48: #{nonshared_model_forward.1} parent=0 // pred_region
    _
  $region49: #{nonshared_model_forward.1} parent=0 // pred_fallthru
    _

</llo_original>
